<compile_context>
chip_gen: v7x
topology: tpu7x:2x2x1
jax: 0.10.0
libtpu: 0.0.40
codegen_flags: <defaults>
</compile_context>

<pallas_src>
import functools

import jax
import jax.numpy as jnp
from jax import lax
from jax.experimental import pallas as pl
from jax.experimental.pallas import tpu as pltpu

_LANE = 128


def _round_up(n, m):
    return ((n + m - 1) // m) * m


def _gelu_exact(x):
    # PyTorch nn.GELU() default = exact erf-based GELU (computed in f32).
    return 0.5 * x * (1.0 + lax.erf(x * jnp.float32(0.7071067811865476)))


def mlp_kernel(x_ref, w1_ref, b1_ref, w2_ref, b2_ref, o_ref):
    # fc1: (tm, Cin) @ (Cin, H) -> f32 accumulate on the MXU.
    h = jnp.dot(x_ref[...], w1_ref[...], preferred_element_type=jnp.float32)
    # bias + exact GELU epilogue in f32 (dropout p=0.0 -> identity).
    h = _gelu_exact(h + b1_ref[...])
    # fc2: (tm, H) @ (H, Cout) -> f32 accumulate; feed MXU in the weight dtype.
    y = jnp.dot(h.astype(w2_ref.dtype), w2_ref[...],
                preferred_element_type=jnp.float32)
    y = y + b2_ref[...]
    # dropout p=0.0 -> identity.
    o_ref[...] = y.astype(o_ref.dtype)


@functools.partial(jax.jit, static_argnames=("tile_m", "mxu_dtype"))
def mlp_forward(x, w1, b1, w2, b2, *, tile_m=256, mxu_dtype=jnp.bfloat16):
    """x: (B, N, Cin). Weights stored as (in, out) so the kernel does x @ W."""
    orig_dtype = x.dtype
    B, N, Cin = x.shape
    H = w1.shape[1]
    Cout = w2.shape[1]
    M = B * N

    # Lane-dense / MXU-friendly padding (zero padding is exact for Linear+GELU).
    Cin_p = _round_up(Cin, _LANE)
    H_p = _round_up(H, _LANE)
    Cout_p = _round_up(Cout, _LANE)
    M_p = _round_up(M, tile_m)

    x2d = x.reshape(M, Cin)
    x2d = jnp.pad(x2d, ((0, M_p - M), (0, Cin_p - Cin))).astype(mxu_dtype)
    w1_p = jnp.pad(w1, ((0, Cin_p - Cin), (0, H_p - H))).astype(mxu_dtype)
    w2_p = jnp.pad(w2, ((0, H_p - H), (0, Cout_p - Cout))).astype(mxu_dtype)
    b1_p = jnp.pad(b1, (0, H_p - H)).astype(jnp.float32).reshape(1, H_p)
    b2_p = jnp.pad(b2, (0, Cout_p - Cout)).astype(jnp.float32).reshape(1, Cout_p)

    grid_m = M_p // tile_m

    # Scoped VMEM budget: double-buffered tiles + resident weights, with
    # headroom for f32 intermediates; clamp well below v7x's 64 MiB physical.
    in_isz = jnp.dtype(mxu_dtype).itemsize
    out_isz = jnp.dtype(orig_dtype).itemsize
    vmem_need = 2 * (
        tile_m * Cin_p * in_isz          # x tile (double buffered)
        + tile_m * Cout_p * out_isz      # out tile
        + Cin_p * H_p * in_isz           # w1
        + H_p * Cout_p * in_isz          # w2
        + (H_p + Cout_p) * 4             # biases
    ) + 2 * tile_m * H_p * 4             # f32 hidden intermediate headroom
    vmem_limit = min(max(2 * vmem_need + (4 << 20), 16 << 20), 48 << 20)

    flops = 2 * M_p * Cin_p * H_p + 2 * M_p * H_p * Cout_p
    bytes_accessed = (M_p * Cin_p * in_isz + Cin_p * H_p * in_isz
                      + H_p * Cout_p * in_isz + (H_p + Cout_p) * 4
                      + M_p * Cout_p * out_isz)

    out2d = pl.pallas_call(
        mlp_kernel,
        out_shape=jax.ShapeDtypeStruct((M_p, Cout_p), orig_dtype),
        grid_spec=pltpu.PrefetchScalarGridSpec(
            num_scalar_prefetch=0,
            grid=(grid_m,),
            in_specs=[
                pl.BlockSpec((tile_m, Cin_p), lambda i: (i, 0)),   # x tile
                pl.BlockSpec((Cin_p, H_p), lambda i: (0, 0)),      # w1 (whole)
                pl.BlockSpec((1, H_p), lambda i: (0, 0)),          # b1
                pl.BlockSpec((H_p, Cout_p), lambda i: (0, 0)),     # w2 (whole)
                pl.BlockSpec((1, Cout_p), lambda i: (0, 0)),       # b2
            ],
            out_specs=pl.BlockSpec((tile_m, Cout_p), lambda i: (i, 0)),
        ),
        compiler_params=pltpu.CompilerParams(
            dimension_semantics=("parallel",),
            vmem_limit_bytes=int(vmem_limit),
        ),
        cost_estimate=pl.CostEstimate(
            flops=flops,
            transcendentals=M_p * H_p,
            bytes_accessed=bytes_accessed,
        ),
    )(x2d, w1_p, b1_p, w2_p, b2_p)

    return out2d[:M, :Cout].reshape(B, N, Cout)


def _reference(x, w1, b1, w2, b2, mxu_dtype=jnp.bfloat16):
    """Pure-JAX reference following the same precision path (bf16 MXU operands,
    f32 accumulation, f32 epilogue)."""
    B, N, Cin = x.shape
    x2 = x.reshape(-1, Cin).astype(mxu_dtype)
    h = jnp.dot(x2, w1.astype(mxu_dtype),
                preferred_element_type=jnp.float32) + b1.astype(jnp.float32)
    h = _gelu_exact(h)
    y = jnp.dot(h.astype(mxu_dtype), w2.astype(mxu_dtype),
                preferred_element_type=jnp.float32) + b2.astype(jnp.float32)
    return y.astype(x.dtype).reshape(B, N, -1)


if __name__ == "__main__":
    # Small shapes consistent with a Swin stage-1 MLP block:
    #   in_features = 96, hidden_features = 4*96 = 384, out_features = 96
    # B*N = 512 tokens -> 2 row tiles of 256 (both v7x TensorCores get work).
    B, N, Cin, H = 2, 256, 96, 384
    Cout = Cin

    key = jax.random.PRNGKey(0)
    kx, kw1, kb1, kw2, kb2 = jax.random.split(key, 5)

    x = jax.random.normal(kx, (B, N, Cin), dtype=jnp.float32)
    # Deterministic synthetic parameters (nn.Linear weights stored transposed
    # as (in, out) so the kernel computes x @ W).
    w1 = jax.random.normal(kw1, (Cin, H), dtype=jnp.float32) * 0.05
    b1 = jax.random.normal(kb1, (H,), dtype=jnp.float32) * 0.01
    w2 = jax.random.normal(kw2, (H, Cout), dtype=jnp.float32) * 0.05
    b2 = jax.random.normal(kb2, (Cout,), dtype=jnp.float32) * 0.01

    y = mlp_forward(x, w1, b1, w2, b2, tile_m=256)
    y = jax.block_until_ready(y)

    y_ref = _reference(x, w1, b1, w2, b2)
    assert y.shape == (B, N, Cout)
    # bf16 MXU operands on both paths; tolerance covers accumulation-order and
    # bf16 re-rounding differences between Pallas and XLA.
    assert jnp.allclose(y, y_ref, atol=2e-2, rtol=2e-2), "mismatch vs reference"

    print("KERNEL_OK")
</pallas_src>

<mosaic_0001>
module attributes {stable_mosaic.version = 11 : i64} {
  func.func @mlp_kernel(%arg0: i32, %arg1: memref<256x128xbf16, #tpu.memory_space<vmem>>, %arg2: memref<128x384xbf16, #tpu.memory_space<vmem>>, %arg3: memref<1x384xf32, #tpu.memory_space<vmem>>, %arg4: memref<384x128xbf16, #tpu.memory_space<vmem>>, %arg5: memref<1x128xf32, #tpu.memory_space<vmem>>, %arg6: memref<256x128xf32, #tpu.memory_space<vmem>>) attributes {dimension_semantics = [#tpu.dimension_semantics<parallel>], iteration_bounds = array<i64: 2>, scalar_prefetch = 0 : i64, scratch_operands = 0 : i64, tpu.core_type = #tpu.core_type<tc>, window_params = [{transform_indices = @transform_0, window_bounds = array<i64: 256, 128>}, {pipeline_mode = #tpu.pipeline_mode<synchronous>, transform_indices = @transform_1, window_bounds = array<i64: 128, 384>}, {pipeline_mode = #tpu.pipeline_mode<synchronous>, transform_indices = @transform_2, window_bounds = array<i64: 1, 384>}, {pipeline_mode = #tpu.pipeline_mode<synchronous>, transform_indices = @transform_3, window_bounds = array<i64: 384, 128>}, {pipeline_mode = #tpu.pipeline_mode<synchronous>, transform_indices = @transform_4, window_bounds = array<i64: 1, 128>}, {transform_indices = @transform_5, window_bounds = array<i64: 256, 128>}]} {
    %c0 = arith.constant 0 : index
    %c0_0 = arith.constant 0 : index
    %0 = vector.load %arg1[%c0, %c0_0] : memref<256x128xbf16, #tpu.memory_space<vmem>>, vector<256x128xbf16>
    %c0_1 = arith.constant 0 : index
    %c0_2 = arith.constant 0 : index
    %1 = vector.load %arg2[%c0_1, %c0_2] : memref<128x384xbf16, #tpu.memory_space<vmem>>, vector<128x384xbf16>
    %cst = arith.constant dense<0.000000e+00> : vector<256x384xf32>
    %2 = tpu.matmul %0, %1, %cst {dimension_numbers = #tpu.dot_dimension_numbers<[1], [0], [0], [1], [0, 0, 1, 1], [], []>} : vector<256x128xbf16>, vector<128x384xbf16>, vector<256x384xf32> -> vector<256x384xf32>
    %c0_3 = arith.constant 0 : index
    %c0_4 = arith.constant 0 : index
    %3 = vector.load %arg3[%c0_3, %c0_4] : memref<1x384xf32, #tpu.memory_space<vmem>>, vector<1x384xf32>
    %4 = vector.broadcast %3 : vector<1x384xf32> to vector<256x384xf32>
    %5 = arith.addf %2, %4 : vector<256x384xf32>
    %cst_5 = arith.constant 5.000000e-01 : f32
    %6 = vector.broadcast %cst_5 : f32 to vector<256x384xf32>
    %7 = arith.mulf %6, %5 : vector<256x384xf32>
    %cst_6 = arith.constant 0.707106769 : f32
    %8 = vector.broadcast %cst_6 : f32 to vector<256x384xf32>
    %9 = arith.mulf %5, %8 : vector<256x384xf32>
    %10 = math.erf %9 : vector<256x384xf32>
    %cst_7 = arith.constant 1.000000e+00 : f32
    %11 = vector.broadcast %cst_7 : f32 to vector<256x384xf32>
    %12 = arith.addf %11, %10 : vector<256x384xf32>
    %13 = arith.mulf %7, %12 : vector<256x384xf32>
    %14 = arith.truncf %13 : vector<256x384xf32> to vector<256x384xbf16>
    %c0_8 = arith.constant 0 : index
    %c0_9 = arith.constant 0 : index
    %15 = vector.load %arg4[%c0_8, %c0_9] : memref<384x128xbf16, #tpu.memory_space<vmem>>, vector<384x128xbf16>
    %cst_10 = arith.constant dense<0.000000e+00> : vector<256x128xf32>
    %16 = tpu.matmul %14, %15, %cst_10 {dimension_numbers = #tpu.dot_dimension_numbers<[1], [0], [0], [1], [0, 0, 1, 1], [], []>} : vector<256x384xbf16>, vector<384x128xbf16>, vector<256x128xf32> -> vector<256x128xf32>
    %c0_11 = arith.constant 0 : index
    %c0_12 = arith.constant 0 : index
    %17 = vector.load %arg5[%c0_11, %c0_12] : memref<1x128xf32, #tpu.memory_space<vmem>>, vector<1x128xf32>
    %18 = vector.broadcast %17 : vector<1x128xf32> to vector<256x128xf32>
    %19 = arith.addf %16, %18 : vector<256x128xf32>
    %c0_13 = arith.constant 0 : index
    %c0_14 = arith.constant 0 : index
    %20 = vector.load %arg6[%c0_13, %c0_14] : memref<256x128xf32, #tpu.memory_space<vmem>>, vector<256x128xf32>
    tpu.vector_store %arg6[%c0_13, %c0_14], %19 {strides = array<i32>} : memref<256x128xf32, #tpu.memory_space<vmem>>, vector<256x128xf32>,
    return
  }
  func.func @transform_0(%arg0: i32) -> (i32, i32) {
    %c0_i32 = arith.constant 0 : i32
    %c0_i32_0 = arith.constant 0 : i32
    return %arg0, %c0_i32 : i32, i32
  }
  func.func @transform_1(%arg0: i32) -> (i32, i32) {
    %c0_i32 = arith.constant 0 : i32
    %c0_i32_0 = arith.constant 0 : i32
    %c0_i32_1 = arith.constant 0 : i32
    return %c0_i32, %c0_i32_0 : i32, i32
  }
  func.func @transform_2(%arg0: i32) -> (i32, i32) {
    %c0_i32 = arith.constant 0 : i32
    %c0_i32_0 = arith.constant 0 : i32
    %c0_i32_1 = arith.constant 0 : i32
    return %c0_i32, %c0_i32_0 : i32, i32
  }
  func.func @transform_3(%arg0: i32) -> (i32, i32) {
    %c0_i32 = arith.constant 0 : i32
    %c0_i32_0 = arith.constant 0 : i32
    %c0_i32_1 = arith.constant 0 : i32
    return %c0_i32, %c0_i32_0 : i32, i32
  }
  func.func @transform_4(%arg0: i32) -> (i32, i32) {
    %c0_i32 = arith.constant 0 : i32
    %c0_i32_0 = arith.constant 0 : i32
    %c0_i32_1 = arith.constant 0 : i32
    return %c0_i32, %c0_i32_0 : i32, i32
  }
  func.func @transform_5(%arg0: i32) -> (i32, i32) {
    %c0_i32 = arith.constant 0 : i32
    %c0_i32_0 = arith.constant 0 : i32
    return %arg0, %c0_i32 : i32, i32
  }
}

</mosaic_0001>

<llo_original>
// kernel: mlp_forward.1
$region0: #{mlp_forward.1}
  #allocation0 [shape = 'u32[]', space=smem, size = 0x4, offset = 0x4, fixed_abs, tag = 'smem constant byte address 0x4 - core index']
  #allocation1 [shape = 'u32[144,128]{1,0:T(1,128)}', space=vmem, size = 0x12000, scoped, tag = 'internal scratch']
  %s0 = inlined_call_operand.vmem [shape: bf16[512,128], index: 0, kind: input, shape index: {}]
  %s1 = inlined_call_operand.vmem [shape: bf16[128,384], index: 1, kind: input, shape index: {}]
  %s2 = inlined_call_operand.vmem [shape: f32[1,384], index: 2, kind: input, shape index: {}]
  %s3 = inlined_call_operand.vmem [shape: bf16[384,128], index: 3, kind: input, shape index: {}]
  %s4 = inlined_call_operand.vmem [shape: f32[1,128], index: 4, kind: input, shape index: {}]
  %s5 = inlined_call_operand.vmem [shape: f32[512,128], index: 5, kind: output, shape index: {}]
  %s6 = sld [smem:[#allocation0]]
  $region53: #{mlp_forward.1} parent=0
    _
  %s8 = ssub.s32 1, %s6
  %s9 = scalar_select 0, %s8, %s6
  loop: start=0, step=1, limit=4
  $region2: #{mlp_forward.1} parent=0 // loop_pre_header
    _
  $region3: #{mlp_forward.1} parent=0 // loop_header
    %s11 = sphi 0, %s15
    %p12 = scmp.ge.s32.totalorder %s11, 4
    %s21 = sphi 0, %s23
    %s24 = sphi 0, %s21
    %s25 = sphi 0, %s24
    %s41 = sphi 0, %s25
    %s45 = sphi 0, %s45
    %s47 = sphi 0, %s45
    %s48 = sphi 0, %s47
    %s62 = sphi 0, %s48
    %s66 = sphi 0, %s66
    %s68 = sphi 0, %s66
    %s69 = sphi 0, %s68
    %s83 = sphi 0, %s69
    %s87 = sphi 0, %s87
    %s89 = sphi 0, %s87
    %s90 = sphi 0, %s89
    %s104 = sphi 0, %s90
    %s108 = sphi 0, %s108
    %s110 = sphi 0, %s108
    %s111 = sphi 0, %s110
    %s125 = sphi 0, %s111
    %s131 = sphi 0, %s133
    %s134 = sphi 0, %s131
    %s135 = sphi 0, %s134
    %s151 = sphi 0, %s135
  $region4: #{mlp_forward.1} parent=0 // loop_header_branch
    %14 = sbr.rel (%p12) target = $region8
  $region5: #{mlp_forward.1} parent=0 // loop_body
    %s16 = ssub.s32 %s11, 1
    %s17 = ssub.s32 %s11, 2
    %s18 = sadd.s32 %s11, 1
    %s19 = ssub.s32 %s11, %s18
    %p20 = scmp.eq.s32.totalorder %s19, 0
    %s22 = sadd.s32 %s21, 1
    %s23 = scalar_select %p20, %s21, %s22
    %p26 = pneg %p20
    %p27 = scmp.eq.s32.totalorder %s11, 1
    %p28 = por %p26, %p27
    %p29 = scmp.ne.s32.totalorder %s21, %s24
    %p30 = scmp.eq.s32.totalorder %s11, 0
    %p31 = por %p29, %p30
    %p32 = scmp.ne.s32.totalorder %s21, %s24
    %p33 = scmp.eq.s32.totalorder %s16, 1
    %p34 = por %p32, %p33
    %p35 = scmp.ne.s32.totalorder %s24, %s25
    %p36 = scmp.eq.s32.totalorder %s16, 0
    %p37 = por %p35, %p36
    %p38 = scmp.ne.s32.totalorder %s24, %s25
    %p39 = scmp.eq.s32.totalorder %s17, 1
    %p40 = por %p38, %p39
    %p42 = scmp.ne.s32.totalorder %s25, %s41
    %p43 = scmp.eq.s32.totalorder %s17, 0
    %p44 = por %p42, %p43
    %s46 = sadd.s32 %s45, 1
    %p49 = scmp.eq.s32.totalorder %s11, 1
    %p50 = scmp.ne.s32.totalorder %s45, %s47
    %p51 = scmp.eq.s32.totalorder %s11, 0
    %p52 = por %p50, %p51
    %p53 = scmp.ne.s32.totalorder %s45, %s47
    %p54 = scmp.eq.s32.totalorder %s16, 1
    %p55 = por %p53, %p54
    %p56 = scmp.ne.s32.totalorder %s47, %s48
    %p57 = scmp.eq.s32.totalorder %s16, 0
    %p58 = por %p56, %p57
    %p59 = scmp.ne.s32.totalorder %s47, %s48
    %p60 = scmp.eq.s32.totalorder %s17, 1
    %p61 = por %p59, %p60
    %p63 = scmp.ne.s32.totalorder %s48, %s62
    %p64 = scmp.eq.s32.totalorder %s17, 0
    %p65 = por %p63, %p64
    %s67 = sadd.s32 %s66, 1
    %p70 = scmp.eq.s32.totalorder %s11, 1
    %p71 = scmp.ne.s32.totalorder %s66, %s68
    %p72 = scmp.eq.s32.totalorder %s11, 0
    %p73 = por %p71, %p72
    %p74 = scmp.ne.s32.totalorder %s66, %s68
    %p75 = scmp.eq.s32.totalorder %s16, 1
    %p76 = por %p74, %p75
    %p77 = scmp.ne.s32.totalorder %s68, %s69
    %p78 = scmp.eq.s32.totalorder %s16, 0
    %p79 = por %p77, %p78
    %p80 = scmp.ne.s32.totalorder %s68, %s69
    %p81 = scmp.eq.s32.totalorder %s17, 1
    %p82 = por %p80, %p81
    %p84 = scmp.ne.s32.totalorder %s69, %s83
    %p85 = scmp.eq.s32.totalorder %s17, 0
    %p86 = por %p84, %p85
    %s88 = sadd.s32 %s87, 1
    %p91 = scmp.eq.s32.totalorder %s11, 1
    %p92 = scmp.ne.s32.totalorder %s87, %s89
    %p93 = scmp.eq.s32.totalorder %s11, 0
    %p94 = por %p92, %p93
    %p95 = scmp.ne.s32.totalorder %s87, %s89
    %p96 = scmp.eq.s32.totalorder %s16, 1
    %p97 = por %p95, %p96
    %p98 = scmp.ne.s32.totalorder %s89, %s90
    %p99 = scmp.eq.s32.totalorder %s16, 0
    %p100 = por %p98, %p99
    %p101 = scmp.ne.s32.totalorder %s89, %s90
    %p102 = scmp.eq.s32.totalorder %s17, 1
    %p103 = por %p101, %p102
    %p105 = scmp.ne.s32.totalorder %s90, %s104
    %p106 = scmp.eq.s32.totalorder %s17, 0
    %p107 = por %p105, %p106
    %s109 = sadd.s32 %s108, 1
    %p112 = scmp.eq.s32.totalorder %s11, 1
    %p113 = scmp.ne.s32.totalorder %s108, %s110
    %p114 = scmp.eq.s32.totalorder %s11, 0
    %p115 = por %p113, %p114
    %p116 = scmp.ne.s32.totalorder %s108, %s110
    %p117 = scmp.eq.s32.totalorder %s16, 1
    %p118 = por %p116, %p117
    %p119 = scmp.ne.s32.totalorder %s110, %s111
    %p120 = scmp.eq.s32.totalorder %s16, 0
    %p121 = por %p119, %p120
    %p122 = scmp.ne.s32.totalorder %s110, %s111
    %p123 = scmp.eq.s32.totalorder %s17, 1
    %p124 = por %p122, %p123
    %p126 = scmp.ne.s32.totalorder %s111, %s125
    %p127 = scmp.eq.s32.totalorder %s17, 0
    %p128 = por %p126, %p127
    %s129 = ssub.s32 %s11, %s18
    %p130 = scmp.eq.s32.totalorder %s129, 0
    %s132 = sadd.s32 %s131, 1
    %s133 = scalar_select %p130, %s131, %s132
    %p136 = pneg %p130
    %p137 = scmp.eq.s32.totalorder %s11, 1
    %p138 = por %p136, %p137
    %p139 = scmp.ne.s32.totalorder %s131, %s134
    %p140 = scmp.eq.s32.totalorder %s11, 0
    %p141 = por %p139, %p140
    %p142 = scmp.ne.s32.totalorder %s131, %s134
    %p143 = scmp.eq.s32.totalorder %s16, 1
    %p144 = por %p142, %p143
    %p145 = scmp.ne.s32.totalorder %s134, %s135
    %p146 = scmp.eq.s32.totalorder %s16, 0
    %p147 = por %p145, %p146
    %p148 = scmp.ne.s32.totalorder %s134, %s135
    %p149 = scmp.eq.s32.totalorder %s17, 1
    %p150 = por %p148, %p149
    %p152 = scmp.ne.s32.totalorder %s135, %s151
    %p153 = scmp.eq.s32.totalorder %s17, 0
    %p154 = por %p152, %p153
    %p155 = scmp.le.s32.totalorder 1, %s11
    %p156 = scmp.lt.s32.totalorder %s11, 3
    %p157 = pnand %p155, %p156
    %p158 = pneg %p157
    // Predicated region
    $region9: #{mlp_forward.1} parent=5 // pred_check
      _
    $region10: #{mlp_forward.1} parent=5 // pred_check_branch
      %160 = sbr.rel (%p157) target = $region12
    $region11: #{mlp_forward.1} parent=5 // pred_region
      %s161 = ssub.s32 %s11, 1
      // Predicated region
      $region13: #{mlp_forward.1} parent=11 // pred_check
        %p162 = pneg %p58
      $region14: #{mlp_forward.1} parent=11 // pred_check_branch
        %164 = sbr.rel (%p162) target = $region16
      $region15: #{mlp_forward.1} parent=11 // pred_region
        _
      $region16: #{mlp_forward.1} parent=11 // pred_fallthru
        _
      // Predicated region
      $region17: #{mlp_forward.1} parent=11 // pred_check
        %p165 = pneg %p79
      $region18: #{mlp_forward.1} parent=11 // pred_check_branch
        %167 = sbr.rel (%p165) target = $region20
      $region19: #{mlp_forward.1} parent=11 // pred_region
        _
      $region20: #{mlp_forward.1} parent=11 // pred_fallthru
        _
      // Predicated region
      $region21: #{mlp_forward.1} parent=11 // pred_check
        %p168 = pneg %p100
      $region22: #{mlp_forward.1} parent=11 // pred_check_branch
        %170 = sbr.rel (%p168) target = $region24
      $region23: #{mlp_forward.1} parent=11 // pred_region
        _
      $region24: #{mlp_forward.1} parent=11 // pred_fallthru
        _
      // Predicated region
      $region25: #{mlp_forward.1} parent=11 // pred_check
        %p171 = pneg %p121
      $region26: #{mlp_forward.1} parent=11 // pred_check_branch
        %173 = sbr.rel (%p171) target = $region28
      $region27: #{mlp_forward.1} parent=11 // pred_region
        _
      $region28: #{mlp_forward.1} parent=11 // pred_fallthru
        _
    $region12: #{mlp_forward.1} parent=5 // pred_fallthru
      _
    %p174 = scmp.lt.s32.totalorder %s11, 2
    // Predicated region
    $region29: #{mlp_forward.1} parent=5 // pred_check
      %p175 = pneg %p174
    $region30: #{mlp_forward.1} parent=5 // pred_check_branch
      %177 = sbr.rel (%p175) target = $region32
    $region31: #{mlp_forward.1} parent=5 // pred_region
      // Predicated region
      $region33: #{mlp_forward.1} parent=31 // pred_check
        %p178 = pneg %p31
      $region34: #{mlp_forward.1} parent=31 // pred_check_branch
        %180 = sbr.rel (%p178) target = $region36
      $region35: #{mlp_forward.1} parent=31 // pred_region
        %s181 = smul.u32 32, %s11
        %p182 = scmp.lt.s32.totalorder %s181, 63
        %s183 = scalar_select %p182, %s181, 63
        %s184 = smul.addr %s183, 4
        %s185 = scalar_lea.vmem %s0, %s184
        %s186 = smul.u32 32, %s11
      $region36: #{mlp_forward.1} parent=31 // pred_fallthru
        _
    $region32: #{mlp_forward.1} parent=5 // pred_fallthru
      _
    %p187 = scmp.le.s32.totalorder 1, %s11
    %p188 = scmp.lt.s32.totalorder %s11, 3
    %p189 = pnand %p187, %p188
    %p190 = pneg %p189
    // Predicated region
    $region37: #{mlp_forward.1} parent=5 // pred_check
      _
    $region38: #{mlp_forward.1} parent=5 // pred_check_branch
      %192 = sbr.rel (%p189) target = $region40
    $region39: #{mlp_forward.1} parent=5 // pred_region
      %s193 = ssub.s32 %s11, 1
      %s194 = smul.u32 32, %s16
      %p195 = scmp.lt.s32.totalorder %s194, 63
      %s196 = scalar_select %p195, %s194, 63
      %s197 = smul.addr %s196, 4
      %s198 = scalar_lea.vmem %s0, %s197
      %p199 = pneg %p37
      %p200 = pneg %p34
      %p201 = pneg %p58
      %p202 = pneg %p55
      %p203 = pneg %p79
      %p204 = pneg %p76
      %p205 = pneg %p100
      %p206 = pneg %p97
      %p207 = pneg %p121
      %p208 = pneg %p118
      %p209 = pneg %p147
      %p210 = pneg %p144
      %s211 = smul.u32 32, %s16
      %p212 = scmp.lt.s32.totalorder %s211, 63
      %s213 = scalar_select %p212, %s211, 63
      %s214 = smul.addr %s213, 8
      %s215 = scalar_lea.vmem %s5, %s214
      %s216 = smul.u32 32, %s16
      %p217 = scmp.lt.s32.totalorder %s216, 63
      %s218 = scalar_select %p217, %s216, 63
      %s219 = smul.addr %s218, 4
      %s220 = scalar_lea.vmem %s0, %s219
      %s221 = smul.u32 32, %s16
      %s222 = smul.u32 32, %s16
      %p223 = scmp.lt.s32.totalorder %s222, 63
      %s224 = scalar_select %p223, %s222, 63
      %s225 = smul.addr %s224, 8
      %s226 = scalar_lea.vmem %s5, %s225
      %s227 = smul.u32 32, %s16
      %v229 = vld [vmem:[%s220] sm:$0xf]
      %v230 = vld [vmem:[%s220 + $0x4] sm:$0xf]
      %v231 = vld [vmem:[%s220 + $0x8] sm:$0xf]
      %v232 = vld [vmem:[%s220 + $0xc] sm:$0xf]
      %v233 = vld [vmem:[%s220 + $0x10] sm:$0xf]
      %v234 = vld [vmem:[%s220 + $0x14] sm:$0xf]
      %v235 = vld [vmem:[%s220 + $0x18] sm:$0xf]
      %v236 = vld [vmem:[%s220 + $0x1c] sm:$0xf]
      %v237 = vld [vmem:[%s220 + $0x20] sm:$0xf]
      %v238 = vld [vmem:[%s220 + $0x24] sm:$0xf]
      %v239 = vld [vmem:[%s220 + $0x28] sm:$0xf]
      %v240 = vld [vmem:[%s220 + $0x2c] sm:$0xf]
      %v241 = vld [vmem:[%s220 + $0x30] sm:$0xf]
      %v242 = vld [vmem:[%s220 + $0x34] sm:$0xf]
      %v243 = vld [vmem:[%s220 + $0x38] sm:$0xf]
      %v244 = vld [vmem:[%s220 + $0x3c] sm:$0xf]
      %v245 = vld [vmem:[%s220 + $0x40] sm:$0xf]
      %v246 = vld [vmem:[%s220 + $0x44] sm:$0xf]
      %v247 = vld [vmem:[%s220 + $0x48] sm:$0xf]
      %v248 = vld [vmem:[%s220 + $0x4c] sm:$0xf]
      %v249 = vld [vmem:[%s220 + $0x50] sm:$0xf]
      %v250 = vld [vmem:[%s220 + $0x54] sm:$0xf]
      %v251 = vld [vmem:[%s220 + $0x58] sm:$0xf]
      %v252 = vld [vmem:[%s220 + $0x5c] sm:$0xf]
      %v253 = vld [vmem:[%s220 + $0x60] sm:$0xf]
      %v254 = vld [vmem:[%s220 + $0x64] sm:$0xf]
      %v255 = vld [vmem:[%s220 + $0x68] sm:$0xf]
      %v256 = vld [vmem:[%s220 + $0x6c] sm:$0xf]
      %v257 = vld [vmem:[%s220 + $0x70] sm:$0xf]
      %v258 = vld [vmem:[%s220 + $0x74] sm:$0xf]
      %v259 = vld [vmem:[%s220 + $0x78] sm:$0xf]
      %v260 = vld [vmem:[%s220 + $0x7c] sm:$0xf]
      %v261 = vld [vmem:[%s1] sm:$0xff]
      %v262 = vld [vmem:[%s1 + $0x8] sm:$0xf]
      %v263 = vld [vmem:[%s1 + $0xc] sm:$0xff]
      %v264 = vld [vmem:[%s1 + $0x14] sm:$0xf]
      %v265 = vld [vmem:[%s1 + $0x18] sm:$0xff]
      %v266 = vld [vmem:[%s1 + $0x20] sm:$0xf]
      %v267 = vld [vmem:[%s1 + $0x24] sm:$0xff]
      %v268 = vld [vmem:[%s1 + $0x2c] sm:$0xf]
      %v269 = vld [vmem:[%s1 + $0x30] sm:$0xff]
      %v270 = vld [vmem:[%s1 + $0x38] sm:$0xf]
      %v271 = vld [vmem:[%s1 + $0x3c] sm:$0xff]
      %v272 = vld [vmem:[%s1 + $0x44] sm:$0xf]
      %v273 = vld [vmem:[%s1 + $0x48] sm:$0xff]
      %v274 = vld [vmem:[%s1 + $0x50] sm:$0xf]
      %v275 = vld [vmem:[%s1 + $0x54] sm:$0xff]
      %v276 = vld [vmem:[%s1 + $0x5c] sm:$0xf]
      %v277 = vld [vmem:[%s1 + $0x60] sm:$0xff]
      %v278 = vld [vmem:[%s1 + $0x68] sm:$0xf]
      %v279 = vld [vmem:[%s1 + $0x6c] sm:$0xff]
      %v280 = vld [vmem:[%s1 + $0x74] sm:$0xf]
      %v281 = vld [vmem:[%s1 + $0x78] sm:$0xff]
      %v282 = vld [vmem:[%s1 + $0x80] sm:$0xf]
      %v283 = vld [vmem:[%s1 + $0x84] sm:$0xff]
      %v284 = vld [vmem:[%s1 + $0x8c] sm:$0xf]
      %v285 = vld [vmem:[%s1 + $0x90] sm:$0xff]
      %v286 = vld [vmem:[%s1 + $0x98] sm:$0xf]
      %v287 = vld [vmem:[%s1 + $0x9c] sm:$0xff]
      %v288 = vld [vmem:[%s1 + $0xa4] sm:$0xf]
      %v289 = vld [vmem:[%s1 + $0xa8] sm:$0xff]
      %v290 = vld [vmem:[%s1 + $0xb0] sm:$0xf]
      %v291 = vld [vmem:[%s1 + $0xb4] sm:$0xff]
      %v292 = vld [vmem:[%s1 + $0xbc] sm:$0xf]
      %v293 = vld [vmem:[%s2] sm:$0x7]
      %v295 = vlaneseq
      %v296 = vshrl.u32 %v295, 7
      %v297 = vsub.s32 0, %v296
      %v298 = vrot.slane %v293, %v297
      %v299 = vlaneseq
      %v300 = vshrl.u32 %v299, 7
      %v301 = vsub.s32 1, %v300
      %v302 = vrot.slane %v293, %v301
      %v303 = vlaneseq
      %v304 = vshrl.u32 %v303, 7
      %v305 = vsub.s32 2, %v304
      %v306 = vrot.slane %v293, %v305
      %v342 = vunpack.c.l.b16 %v229
      %v343 = vunpack.c.l.b16 %v230
      %v344 = vunpack.c.l.b16 %v231
      %v345 = vunpack.c.l.b16 %v232
      %v346 = vunpack.c.l.b16 %v233
      %v347 = vunpack.c.l.b16 %v234
      %v348 = vunpack.c.l.b16 %v235
      %v349 = vunpack.c.l.b16 %v236
      %v350 = vunpack.c.l.b16 %v237
      %v351 = vunpack.c.l.b16 %v238
      %v352 = vunpack.c.l.b16 %v239
      %v353 = vunpack.c.l.b16 %v240
      %v354 = vunpack.c.l.b16 %v241
      %v355 = vunpack.c.l.b16 %v242
      %v356 = vunpack.c.l.b16 %v243
      %v357 = vunpack.c.l.b16 %v244
      %v358 = vunpack.c.l.b16 %v245
      %v359 = vunpack.c.l.b16 %v246
      %v360 = vunpack.c.l.b16 %v247
      %v361 = vunpack.c.l.b16 %v248
      %v362 = vunpack.c.l.b16 %v249
      %v363 = vunpack.c.l.b16 %v250
      %v364 = vunpack.c.l.b16 %v251
      %v365 = vunpack.c.l.b16 %v252
      %v366 = vunpack.c.l.b16 %v253
      %v367 = vunpack.c.l.b16 %v254
      %v368 = vunpack.c.l.b16 %v255
      %v369 = vunpack.c.l.b16 %v256
      %v370 = vunpack.c.l.b16 %v257
      %v371 = vunpack.c.l.b16 %v258
      %v372 = vunpack.c.l.b16 %v259
      %v373 = vunpack.c.l.b16 %v260
      %v374 = vpack.c.b16 %v343, %v342
      %v375 = vpack.c.b16 %v345, %v344
      %v376 = vpack.c.b16 %v347, %v346
      %v377 = vpack.c.b16 %v349, %v348
      %v378 = vpack.c.b16 %v351, %v350
      %v379 = vpack.c.b16 %v353, %v352
      %v380 = vpack.c.b16 %v355, %v354
      %v381 = vpack.c.b16 %v357, %v356
      %v382 = vpack.c.b16 %v359, %v358
      %v383 = vpack.c.b16 %v361, %v360
      %v384 = vpack.c.b16 %v363, %v362
      %v385 = vpack.c.b16 %v365, %v364
      %v386 = vpack.c.b16 %v367, %v366
      %v387 = vpack.c.b16 %v369, %v368
      %v388 = vpack.c.b16 %v371, %v370
      %v389 = vpack.c.b16 %v373, %v372
      %v438 = vunpack.c.l.b16 %v261
      %v439 = vunpack.c.h.b16 %v261
      %v440 = vunpack.c.l.b16 %v262
      %v441 = vunpack.c.l.b16 %v263
      %v442 = vunpack.c.h.b16 %v263
      %v443 = vunpack.c.l.b16 %v264
      %v444 = vunpack.c.l.b16 %v265
      %v445 = vunpack.c.h.b16 %v265
      %v446 = vunpack.c.l.b16 %v266
      %v447 = vunpack.c.l.b16 %v267
      %v448 = vunpack.c.h.b16 %v267
      %v449 = vunpack.c.l.b16 %v268
      %v450 = vunpack.c.l.b16 %v269
      %v451 = vunpack.c.h.b16 %v269
      %v452 = vunpack.c.l.b16 %v270
      %v453 = vunpack.c.l.b16 %v271
      %v454 = vunpack.c.h.b16 %v271
      %v455 = vunpack.c.l.b16 %v272
      %v456 = vunpack.c.l.b16 %v273
      %v457 = vunpack.c.h.b16 %v273
      %v458 = vunpack.c.l.b16 %v274
      %v459 = vunpack.c.l.b16 %v275
      %v460 = vunpack.c.h.b16 %v275
      %v461 = vunpack.c.l.b16 %v276
      %v462 = vunpack.c.l.b16 %v277
      %v463 = vunpack.c.h.b16 %v277
      %v464 = vunpack.c.l.b16 %v278
      %v465 = vunpack.c.l.b16 %v279
      %v466 = vunpack.c.h.b16 %v279
      %v467 = vunpack.c.l.b16 %v280
      %v468 = vunpack.c.l.b16 %v281
      %v469 = vunpack.c.h.b16 %v281
      %v470 = vunpack.c.l.b16 %v282
      %v471 = vunpack.c.l.b16 %v283
      %v472 = vunpack.c.h.b16 %v283
      %v473 = vunpack.c.l.b16 %v284
      %v474 = vunpack.c.l.b16 %v285
      %v475 = vunpack.c.h.b16 %v285
      %v476 = vunpack.c.l.b16 %v286
      %v477 = vunpack.c.l.b16 %v287
      %v478 = vunpack.c.h.b16 %v287
      %v479 = vunpack.c.l.b16 %v288
      %v480 = vunpack.c.l.b16 %v289
      %v481 = vunpack.c.h.b16 %v289
      %v482 = vunpack.c.l.b16 %v290
      %v483 = vunpack.c.l.b16 %v291
      %v484 = vunpack.c.h.b16 %v291
      %v485 = vunpack.c.l.b16 %v292
      %v486 = vpack.c.b16 %v441, %v438
      %v487 = vpack.c.b16 %v442, %v439
      %v488 = vpack.c.b16 %v443, %v440
      %v489 = vpack.c.b16 %v447, %v444
      %v490 = vpack.c.b16 %v448, %v445
      %v491 = vpack.c.b16 %v449, %v446
      %v492 = vpack.c.b16 %v453, %v450
      %v493 = vpack.c.b16 %v454, %v451
      %v494 = vpack.c.b16 %v455, %v452
      %v495 = vpack.c.b16 %v459, %v456
      %v496 = vpack.c.b16 %v460, %v457
      %v497 = vpack.c.b16 %v461, %v458
      %v498 = vpack.c.b16 %v465, %v462
      %v499 = vpack.c.b16 %v466, %v463
      %v500 = vpack.c.b16 %v467, %v464
      %v501 = vpack.c.b16 %v471, %v468
      %v502 = vpack.c.b16 %v472, %v469
      %v503 = vpack.c.b16 %v473, %v470
      %v504 = vpack.c.b16 %v477, %v474
      %v505 = vpack.c.b16 %v478, %v475
      %v506 = vpack.c.b16 %v479, %v476
      %v507 = vpack.c.b16 %v483, %v480
      %v508 = vpack.c.b16 %v484, %v481
      %v509 = vpack.c.b16 %v485, %v482
      %534 = vmatprep.subr.bf16.mxu0 %v487
      %535 = vmatpush1.bf16.msra.mxu0 %v486
      %536 = vmatprep.subr.bf16.mxu0 %v490
      %537 = vmatpush1.bf16.msra.mxu0 %v489
      %538 = vmatprep.subr.bf16.mxu0 %v493
      %539 = vmatpush1.bf16.msra.mxu0 %v492
      %540 = vmatprep.subr.bf16.mxu0 %v496
      %541 = vmatpush1.bf16.msra.mxu0 %v495
      %542 = vmatprep.subr.bf16.mxu0 %v499
      %543 = vmatpush1.bf16.msra.mxu0 %v498
      %544 = vmatprep.subr.bf16.mxu0 %v502
      %545 = vmatpush1.bf16.msra.mxu0 %v501
      %546 = vmatprep.subr.bf16.mxu0 %v505
      %547 = vmatpush1.bf16.msra.mxu0 %v504
      %548 = vmatprep.subr.bf16.mxu0 %v508
      %549 = vmatpush1.bf16.msra.mxu0 %v507
      %550 = vmatprep.subr.bf16.mxu0 0
      %551 = vmatpush1.bf16.msra.mxu0 0
      %552 = vmatprep.subr.bf16.mxu0 0
      %553 = vmatpush1.bf16.msra.mxu0 0
      %554 = vmatprep.subr.bf16.mxu0 0
      %555 = vmatpush1.bf16.msra.mxu0 0
      %556 = vmatprep.subr.bf16.mxu0 0
      %557 = vmatpush1.bf16.msra.mxu0 0
      %558 = vmatprep.subr.bf16.mxu0 0
      %559 = vmatpush1.bf16.msra.mxu0 0
      %560 = vmatprep.subr.bf16.mxu0 0
      %561 = vmatpush1.bf16.msra.mxu0 0
      %562 = vmatprep.subr.bf16.mxu0 0
      %563 = vmatpush1.bf16.msra.mxu0 0
      %564 = vmatprep.subr.bf16.mxu0 0
      %565 = vmatpush1.bf16.msra.mxu0 0
      %566 = vmatprep.mubr.bf16.mxu0 0
      %567 = vmatmul.mubr.bf16.gmra.mrb[0].mxu0 %v374
      %v568 = vpop.f32.mrb[0].mxu0
      %v569 = vadd.f32 %v298, %v568
      %v570 = vpop.f32.mrb[0].mxu0
      %v571 = vadd.f32 %v302, %v570
      %v572 = vpop.f32.mrb[0].mxu0
      %v573 = vadd.f32 %v298, %v572
      %v574 = vpop.f32.mrb[0].mxu0
      %v575 = vadd.f32 %v302, %v574
      %576 = vmatprep.mubr.bf16.mxu0 0
      %577 = vmatmul.mubr.bf16.gmra.mrb[0].mxu0 %v375
      %v578 = vpop.f32.mrb[0].mxu0
      %v579 = vadd.f32 %v298, %v578
      %v580 = vpop.f32.mrb[0].mxu0
      %v581 = vadd.f32 %v302, %v580
      %v582 = vpop.f32.mrb[0].mxu0
      %v583 = vadd.f32 %v298, %v582
      %v584 = vpop.f32.mrb[0].mxu0
      %v585 = vadd.f32 %v302, %v584
      %586 = vmatprep.mubr.bf16.mxu0 0
      %587 = vmatmul.mubr.bf16.gmra.mrb[0].mxu0 %v376
      %v588 = vpop.f32.mrb[0].mxu0
      %v589 = vadd.f32 %v298, %v588
      %v590 = vpop.f32.mrb[0].mxu0
      %v591 = vadd.f32 %v302, %v590
      %v592 = vpop.f32.mrb[0].mxu0
      %v593 = vadd.f32 %v298, %v592
      %v594 = vpop.f32.mrb[0].mxu0
      %v595 = vadd.f32 %v302, %v594
      %596 = vmatprep.mubr.bf16.mxu0 0
      %597 = vmatmul.mubr.bf16.gmra.mrb[0].mxu0 %v377
      %v598 = vpop.f32.mrb[0].mxu0
      %v599 = vadd.f32 %v298, %v598
      %v600 = vpop.f32.mrb[0].mxu0
      %v601 = vadd.f32 %v302, %v600
      %v602 = vpop.f32.mrb[0].mxu0
      %v603 = vadd.f32 %v298, %v602
      %v604 = vpop.f32.mrb[0].mxu0
      %v605 = vadd.f32 %v302, %v604
      %606 = vmatprep.mubr.bf16.mxu0 0
      %607 = vmatmul.mubr.bf16.gmra.mrb[0].mxu0 %v378
      %v608 = vpop.f32.mrb[0].mxu0
      %v609 = vadd.f32 %v298, %v608
      %v610 = vpop.f32.mrb[0].mxu0
      %v611 = vadd.f32 %v302, %v610
      %v612 = vpop.f32.mrb[0].mxu0
      %v613 = vadd.f32 %v298, %v612
      %v614 = vpop.f32.mrb[0].mxu0
      %v615 = vadd.f32 %v302, %v614
      %616 = vmatprep.mubr.bf16.mxu0 0
      %617 = vmatmul.mubr.bf16.gmra.mrb[0].mxu0 %v379
      %v618 = vpop.f32.mrb[0].mxu0
      %v619 = vadd.f32 %v298, %v618
      %v620 = vpop.f32.mrb[0].mxu0
      %v621 = vadd.f32 %v302, %v620
      %v622 = vpop.f32.mrb[0].mxu0
      %v623 = vadd.f32 %v298, %v622
      %v624 = vpop.f32.mrb[0].mxu0
      %v625 = vadd.f32 %v302, %v624
      %626 = vmatprep.mubr.bf16.mxu0 0
      %627 = vmatmul.mubr.bf16.gmra.mrb[0].mxu0 %v380
      %v628 = vpop.f32.mrb[0].mxu0
      %v629 = vadd.f32 %v298, %v628
      %v630 = vpop.f32.mrb[0].mxu0
      %v631 = vadd.f32 %v302, %v630
      %v632 = vpop.f32.mrb[0].mxu0
      %v633 = vadd.f32 %v298, %v632
      %v634 = vpop.f32.mrb[0].mxu0
      %v635 = vadd.f32 %v302, %v634
      %636 = vmatprep.mubr.bf16.mxu0 0
      %637 = vmatmul.mubr.bf16.gmra.mrb[0].mxu0 %v381
      %v638 = vpop.f32.mrb[0].mxu0
      %v639 = vadd.f32 %v298, %v638
      %v640 = vpop.f32.mrb[0].mxu0
      %v641 = vadd.f32 %v302, %v640
      %v642 = vpop.f32.mrb[0].mxu0
      %v643 = vadd.f32 %v298, %v642
      %v644 = vpop.f32.mrb[0].mxu0
      %v645 = vadd.f32 %v302, %v644
      %646 = vmatprep.mubr.bf16.mxu0 0
      %647 = vmatmul.mubr.bf16.gmra.mrb[0].mxu0 %v382
      %v648 = vpop.f32.mrb[0].mxu0
      %v649 = vadd.f32 %v298, %v648
      %v650 = vpop.f32.mrb[0].mxu0
      %v651 = vadd.f32 %v302, %v650
      %v652 = vpop.f32.mrb[0].mxu0
      %v653 = vadd.f32 %v298, %v652
      %v654 = vpop.f32.mrb[0].mxu0
      %v655 = vadd.f32 %v302, %v654
      %656 = vmatprep.mubr.bf16.mxu0 0
      %657 = vmatmul.mubr.bf16.gmra.mrb[0].mxu0 %v383
      %v658 = vpop.f32.mrb[0].mxu0
      %v659 = vadd.f32 %v298, %v658
      %v660 = vpop.f32.mrb[0].mxu0
      %v661 = vadd.f32 %v302, %v660
      %v662 = vpop.f32.mrb[0].mxu0
      %v663 = vadd.f32 %v298, %v662
      %v664 = vpop.f32.mrb[0].mxu0
      %v665 = vadd.f32 %v302, %v664
      %666 = vmatprep.mubr.bf16.mxu0 0
      %667 = vmatmul.mubr.bf16.gmra.mrb[0].mxu0 %v384
      %v668 = vpop.f32.mrb[0].mxu0
      %v669 = vadd.f32 %v298, %v668
      %v670 = vpop.f32.mrb[0].mxu0
      %v671 = vadd.f32 %v302, %v670
      %v672 = vpop.f32.mrb[0].mxu0
      %v673 = vadd.f32 %v298, %v672
      %v674 = vpop.f32.mrb[0].mxu0
      %v675 = vadd.f32 %v302, %v674
      %676 = vmatprep.mubr.bf16.mxu0 0
      %677 = vmatmul.mubr.bf16.gmra.mrb[0].mxu0 %v385
      %v678 = vpop.f32.mrb[0].mxu0
      %v679 = vadd.f32 %v298, %v678
      %v680 = vpop.f32.mrb[0].mxu0
      %v681 = vadd.f32 %v302, %v680
      %v682 = vpop.f32.mrb[0].mxu0
      %v683 = vadd.f32 %v298, %v682
      %v684 = vpop.f32.mrb[0].mxu0
      %v685 = vadd.f32 %v302, %v684
      %686 = vmatprep.mubr.bf16.mxu0 0
      %687 = vmatmul.mubr.bf16.gmra.mrb[0].mxu0 %v386
      %v688 = vpop.f32.mrb[0].mxu0
      %v689 = vadd.f32 %v298, %v688
      %v690 = vpop.f32.mrb[0].mxu0
      %v691 = vadd.f32 %v302, %v690
      %v692 = vpop.f32.mrb[0].mxu0
      %v693 = vadd.f32 %v298, %v692
      %v694 = vpop.f32.mrb[0].mxu0
      %v695 = vadd.f32 %v302, %v694
      %696 = vmatprep.mubr.bf16.mxu0 0
      %697 = vmatmul.mubr.bf16.gmra.mrb[0].mxu0 %v387
      %v698 = vpop.f32.mrb[0].mxu0
      %v699 = vadd.f32 %v298, %v698
      %v700 = vpop.f32.mrb[0].mxu0
      %v701 = vadd.f32 %v302, %v700
      %v702 = vpop.f32.mrb[0].mxu0
      %v703 = vadd.f32 %v298, %v702
      %v704 = vpop.f32.mrb[0].mxu0
      %v705 = vadd.f32 %v302, %v704
      %706 = vmatprep.mubr.bf16.mxu0 0
      %707 = vmatmul.mubr.bf16.gmra.mrb[0].mxu0 %v388
      %v708 = vpop.f32.mrb[0].mxu0
      %v709 = vadd.f32 %v298, %v708
      %v710 = vpop.f32.mrb[0].mxu0
      %v711 = vadd.f32 %v302, %v710
      %v712 = vpop.f32.mrb[0].mxu0
      %v713 = vadd.f32 %v298, %v712
      %v714 = vpop.f32.mrb[0].mxu0
      %v715 = vadd.f32 %v302, %v714
      %716 = vmatprep.mubr.bf16.mxu0 0
      %717 = vmatmul.mubr.bf16.gmra.mrb[0].mxu0 %v389
      %v718 = vpop.f32.mrb[0].mxu0
      %v719 = vadd.f32 %v298, %v718
      %v720 = vpop.f32.mrb[0].mxu0
      %v721 = vadd.f32 %v302, %v720
      %v722 = vpop.f32.mrb[0].mxu0
      %v723 = vadd.f32 %v298, %v722
      %v724 = vpop.f32.mrb[0].mxu0
      %v725 = vadd.f32 %v302, %v724
      %726 = vdwg.mxu0
      %727 = vmatprep.subr.bf16.mxu0 0
      %728 = vmatpush1.bf16.msra.mxu0 %v488
      %729 = vmatprep.subr.bf16.mxu0 0
      %730 = vmatpush1.bf16.msra.mxu0 %v491
      %731 = vmatprep.subr.bf16.mxu0 0
      %732 = vmatpush1.bf16.msra.mxu0 %v494
      %733 = vmatprep.subr.bf16.mxu0 0
      %734 = vmatpush1.bf16.msra.mxu0 %v497
      %735 = vmatprep.subr.bf16.mxu0 0
      %736 = vmatpush1.bf16.msra.mxu0 %v500
      %737 = vmatprep.subr.bf16.mxu0 0
      %738 = vmatpush1.bf16.msra.mxu0 %v503
      %739 = vmatprep.subr.bf16.mxu0 0
      %740 = vmatpush1.bf16.msra.mxu0 %v506
      %741 = vmatprep.subr.bf16.mxu0 0
      %742 = vmatpush1.bf16.msra.mxu0 %v509
      %743 = vmatprep.subr.bf16.mxu0 0
      %744 = vmatpush1.bf16.msra.mxu0 0
      %745 = vmatprep.subr.bf16.mxu0 0
      %746 = vmatpush1.bf16.msra.mxu0 0
      %747 = vmatprep.subr.bf16.mxu0 0
      %748 = vmatpush1.bf16.msra.mxu0 0
      %749 = vmatprep.subr.bf16.mxu0 0
      %750 = vmatpush1.bf16.msra.mxu0 0
      %751 = vmatprep.subr.bf16.mxu0 0
      %752 = vmatpush1.bf16.msra.mxu0 0
      %753 = vmatprep.subr.bf16.mxu0 0
      %754 = vmatpush1.bf16.msra.mxu0 0
      %755 = vmatprep.subr.bf16.mxu0 0
      %756 = vmatpush1.bf16.msra.mxu0 0
      %757 = vmatprep.subr.bf16.mxu0 0
      %758 = vmatpush1.bf16.msra.mxu0 0
      %759 = vmatprep.mubr.bf16.mxu0 0
      %760 = vmatmul.mubr.bf16.gmra.mrb[0].mxu0 %v374
      %v761 = vpop.f32.mrb[0].mxu0
      %v762 = vadd.f32 %v306, %v761
      %v763 = vpop.f32.mrb[0].mxu0
      %v764 = vpop.f32.mrb[0].mxu0
      %v765 = vadd.f32 %v306, %v764
      %v766 = vpop.f32.mrb[0].mxu0
      %767 = vmatprep.mubr.bf16.mxu0 0
      %768 = vmatmul.mubr.bf16.gmra.mrb[0].mxu0 %v375
      %v769 = vpop.f32.mrb[0].mxu0
      %v770 = vadd.f32 %v306, %v769
      %v771 = vpop.f32.mrb[0].mxu0
      %v772 = vpop.f32.mrb[0].mxu0
      %v773 = vadd.f32 %v306, %v772
      %v774 = vpop.f32.mrb[0].mxu0
      %775 = vmatprep.mubr.bf16.mxu0 0
      %776 = vmatmul.mubr.bf16.gmra.mrb[0].mxu0 %v376
      %v777 = vpop.f32.mrb[0].mxu0
      %v778 = vadd.f32 %v306, %v777
      %v779 = vpop.f32.mrb[0].mxu0
      %v780 = vpop.f32.mrb[0].mxu0
      %v781 = vadd.f32 %v306, %v780
      %v782 = vpop.f32.mrb[0].mxu0
      %783 = vmatprep.mubr.bf16.mxu0 0
      %784 = vmatmul.mubr.bf16.gmra.mrb[0].mxu0 %v377
      %v785 = vpop.f32.mrb[0].mxu0
      %v786 = vadd.f32 %v306, %v785
      %v787 = vpop.f32.mrb[0].mxu0
      %v788 = vpop.f32.mrb[0].mxu0
      %v789 = vadd.f32 %v306, %v788
      %v790 = vpop.f32.mrb[0].mxu0
      %791 = vmatprep.mubr.bf16.mxu0 0
      %792 = vmatmul.mubr.bf16.gmra.mrb[0].mxu0 %v378
      %v793 = vpop.f32.mrb[0].mxu0
      %v794 = vadd.f32 %v306, %v793
      %v795 = vpop.f32.mrb[0].mxu0
      %v796 = vpop.f32.mrb[0].mxu0
      %v797 = vadd.f32 %v306, %v796
      %v798 = vpop.f32.mrb[0].mxu0
      %799 = vmatprep.mubr.bf16.mxu0 0
      %800 = vmatmul.mubr.bf16.gmra.mrb[0].mxu0 %v379
      %v801 = vpop.f32.mrb[0].mxu0
      %v802 = vadd.f32 %v306, %v801
      %v803 = vpop.f32.mrb[0].mxu0
      %v804 = vpop.f32.mrb[0].mxu0
      %v805 = vadd.f32 %v306, %v804
      %v806 = vpop.f32.mrb[0].mxu0
      %807 = vmatprep.mubr.bf16.mxu0 0
      %808 = vmatmul.mubr.bf16.gmra.mrb[0].mxu0 %v380
      %v809 = vpop.f32.mrb[0].mxu0
      %v810 = vadd.f32 %v306, %v809
      %v811 = vpop.f32.mrb[0].mxu0
      %v812 = vpop.f32.mrb[0].mxu0
      %v813 = vadd.f32 %v306, %v812
      %v814 = vpop.f32.mrb[0].mxu0
      %815 = vmatprep.mubr.bf16.mxu0 0
      %816 = vmatmul.mubr.bf16.gmra.mrb[0].mxu0 %v381
      %v817 = vpop.f32.mrb[0].mxu0
      %v818 = vadd.f32 %v306, %v817
      %v819 = vpop.f32.mrb[0].mxu0
      %v820 = vpop.f32.mrb[0].mxu0
      %v821 = vadd.f32 %v306, %v820
      %v822 = vpop.f32.mrb[0].mxu0
      %823 = vmatprep.mubr.bf16.mxu0 0
      %824 = vmatmul.mubr.bf16.gmra.mrb[0].mxu0 %v382
      %v825 = vpop.f32.mrb[0].mxu0
      %v826 = vadd.f32 %v306, %v825
      %v827 = vpop.f32.mrb[0].mxu0
      %v828 = vpop.f32.mrb[0].mxu0
      %v829 = vadd.f32 %v306, %v828
      %v830 = vpop.f32.mrb[0].mxu0
      %831 = vmatprep.mubr.bf16.mxu0 0
      %832 = vmatmul.mubr.bf16.gmra.mrb[0].mxu0 %v383
      %v833 = vpop.f32.mrb[0].mxu0
      %v834 = vadd.f32 %v306, %v833
      %v835 = vpop.f32.mrb[0].mxu0
      %v836 = vpop.f32.mrb[0].mxu0
      %v837 = vadd.f32 %v306, %v836
      %v838 = vpop.f32.mrb[0].mxu0
      %839 = vmatprep.mubr.bf16.mxu0 0
      %840 = vmatmul.mubr.bf16.gmra.mrb[0].mxu0 %v384
      %v841 = vpop.f32.mrb[0].mxu0
      %v842 = vadd.f32 %v306, %v841
      %v843 = vpop.f32.mrb[0].mxu0
      %v844 = vpop.f32.mrb[0].mxu0
      %v845 = vadd.f32 %v306, %v844
      %v846 = vpop.f32.mrb[0].mxu0
      %847 = vmatprep.mubr.bf16.mxu0 0
      %848 = vmatmul.mubr.bf16.gmra.mrb[0].mxu0 %v385
      %v849 = vpop.f32.mrb[0].mxu0
      %v850 = vadd.f32 %v306, %v849
      %v851 = vpop.f32.mrb[0].mxu0
      %v852 = vpop.f32.mrb[0].mxu0
      %v853 = vadd.f32 %v306, %v852
      %v854 = vpop.f32.mrb[0].mxu0
      %855 = vmatprep.mubr.bf16.mxu0 0
      %856 = vmatmul.mubr.bf16.gmra.mrb[0].mxu0 %v386
      %v857 = vpop.f32.mrb[0].mxu0
      %v858 = vadd.f32 %v306, %v857
      %v859 = vpop.f32.mrb[0].mxu0
      %v860 = vpop.f32.mrb[0].mxu0
      %v861 = vadd.f32 %v306, %v860
      %v862 = vpop.f32.mrb[0].mxu0
      %863 = vmatprep.mubr.bf16.mxu0 0
      %864 = vmatmul.mubr.bf16.gmra.mrb[0].mxu0 %v387
      %v865 = vpop.f32.mrb[0].mxu0
      %v866 = vadd.f32 %v306, %v865
      %v867 = vpop.f32.mrb[0].mxu0
      %v868 = vpop.f32.mrb[0].mxu0
      %v869 = vadd.f32 %v306, %v868
      %v870 = vpop.f32.mrb[0].mxu0
      %871 = vmatprep.mubr.bf16.mxu0 0
      %872 = vmatmul.mubr.bf16.gmra.mrb[0].mxu0 %v388
      %v873 = vpop.f32.mrb[0].mxu0
      %v874 = vadd.f32 %v306, %v873
      %v875 = vpop.f32.mrb[0].mxu0
      %v876 = vpop.f32.mrb[0].mxu0
      %v877 = vadd.f32 %v306, %v876
      %v878 = vpop.f32.mrb[0].mxu0
      %879 = vmatprep.mubr.bf16.mxu0 0
      %880 = vmatmul.mubr.bf16.gmra.mrb[0].mxu0 %v389
      %v881 = vpop.f32.mrb[0].mxu0
      %v882 = vadd.f32 %v306, %v881
      %v883 = vpop.f32.mrb[0].mxu0
      %v884 = vpop.f32.mrb[0].mxu0
      %v885 = vadd.f32 %v306, %v884
      %v886 = vpop.f32.mrb[0].mxu0
      %887 = vdwg.mxu0
      %v888 = vmul.f32 %v569, 0.5
      %v889 = vmul.f32 %v571, 0.5
      %v890 = vmul.f32 %v762, 0.5
      %v891 = vmul.f32 %v573, 0.5
      %v892 = vmul.f32 %v575, 0.5
      %v893 = vmul.f32 %v765, 0.5
      %v894 = vmul.f32 %v579, 0.5
      %v895 = vmul.f32 %v581, 0.5
      %v896 = vmul.f32 %v770, 0.5
      %v897 = vmul.f32 %v583, 0.5
      %v898 = vmul.f32 %v585, 0.5
      %v899 = vmul.f32 %v773, 0.5
      %v900 = vmul.f32 %v589, 0.5
      %v901 = vmul.f32 %v591, 0.5
      %v902 = vmul.f32 %v778, 0.5
      %v903 = vmul.f32 %v593, 0.5
      %v904 = vmul.f32 %v595, 0.5
      %v905 = vmul.f32 %v781, 0.5
      %v906 = vmul.f32 %v599, 0.5
      %v907 = vmul.f32 %v601, 0.5
      %v908 = vmul.f32 %v786, 0.5
      %v909 = vmul.f32 %v603, 0.5
      %v910 = vmul.f32 %v605, 0.5
      %v911 = vmul.f32 %v789, 0.5
      %v912 = vmul.f32 %v609, 0.5
      %v913 = vmul.f32 %v611, 0.5
      %v914 = vmul.f32 %v794, 0.5
      %v915 = vmul.f32 %v613, 0.5
      %v916 = vmul.f32 %v615, 0.5
      %v917 = vmul.f32 %v797, 0.5
      %v918 = vmul.f32 %v619, 0.5
      %v919 = vmul.f32 %v621, 0.5
      %v920 = vmul.f32 %v802, 0.5
      %v921 = vmul.f32 %v623, 0.5
      %v922 = vmul.f32 %v625, 0.5
      %v923 = vmul.f32 %v805, 0.5
      %v924 = vmul.f32 %v629, 0.5
      %v925 = vmul.f32 %v631, 0.5
      %v926 = vmul.f32 %v810, 0.5
      %v927 = vmul.f32 %v633, 0.5
      %v928 = vmul.f32 %v635, 0.5
      %v929 = vmul.f32 %v813, 0.5
      %v930 = vmul.f32 %v639, 0.5
      %v931 = vmul.f32 %v641, 0.5
      %v932 = vmul.f32 %v818, 0.5
      %v933 = vmul.f32 %v643, 0.5
      %v934 = vmul.f32 %v645, 0.5
      %v935 = vmul.f32 %v821, 0.5
      %v936 = vmul.f32 %v649, 0.5
      %v937 = vmul.f32 %v651, 0.5
      %v938 = vmul.f32 %v826, 0.5
      %v939 = vmul.f32 %v653, 0.5
      %v940 = vmul.f32 %v655, 0.5
      %v941 = vmul.f32 %v829, 0.5
      %v942 = vmul.f32 %v659, 0.5
      %v943 = vmul.f32 %v661, 0.5
      %v944 = vmul.f32 %v834, 0.5
      %v945 = vmul.f32 %v663, 0.5
      %v946 = vmul.f32 %v665, 0.5
      %v947 = vmul.f32 %v837, 0.5
      %v948 = vmul.f32 %v669, 0.5
      %v949 = vmul.f32 %v671, 0.5
      %v950 = vmul.f32 %v842, 0.5
      %v951 = vmul.f32 %v673, 0.5
      %v952 = vmul.f32 %v675, 0.5
      %v953 = vmul.f32 %v845, 0.5
      %v954 = vmul.f32 %v679, 0.5
      %v955 = vmul.f32 %v681, 0.5
      %v956 = vmul.f32 %v850, 0.5
      %v957 = vmul.f32 %v683, 0.5
      %v958 = vmul.f32 %v685, 0.5
      %v959 = vmul.f32 %v853, 0.5
      %v960 = vmul.f32 %v689, 0.5
      %v961 = vmul.f32 %v691, 0.5
      %v962 = vmul.f32 %v858, 0.5
      %v963 = vmul.f32 %v693, 0.5
      %v964 = vmul.f32 %v695, 0.5
      %v965 = vmul.f32 %v861, 0.5
      %v966 = vmul.f32 %v699, 0.5
      %v967 = vmul.f32 %v701, 0.5
      %v968 = vmul.f32 %v866, 0.5
      %v969 = vmul.f32 %v703, 0.5
      %v970 = vmul.f32 %v705, 0.5
      %v971 = vmul.f32 %v869, 0.5
      %v972 = vmul.f32 %v709, 0.5
      %v973 = vmul.f32 %v711, 0.5
      %v974 = vmul.f32 %v874, 0.5
      %v975 = vmul.f32 %v713, 0.5
      %v976 = vmul.f32 %v715, 0.5
      %v977 = vmul.f32 %v877, 0.5
      %v978 = vmul.f32 %v719, 0.5
      %v979 = vmul.f32 %v721, 0.5
      %v980 = vmul.f32 %v882, 0.5
      %v981 = vmul.f32 %v723, 0.5
      %v982 = vmul.f32 %v725, 0.5
      %v983 = vmul.f32 %v885, 0.5
      %v984 = vmul.f32 %v569, 0.70710677
      %v985 = vmul.f32 %v571, 0.70710677
      %v986 = vmul.f32 %v762, 0.70710677
      %v987 = vmul.f32 %v573, 0.70710677
      %v988 = vmul.f32 %v575, 0.70710677
      %v989 = vmul.f32 %v765, 0.70710677
      %v990 = vmul.f32 %v579, 0.70710677
      %v991 = vmul.f32 %v581, 0.70710677
      %v992 = vmul.f32 %v770, 0.70710677
      %v993 = vmul.f32 %v583, 0.70710677
      %v994 = vmul.f32 %v585, 0.70710677
      %v995 = vmul.f32 %v773, 0.70710677
      %v996 = vmul.f32 %v589, 0.70710677
      %v997 = vmul.f32 %v591, 0.70710677
      %v998 = vmul.f32 %v778, 0.70710677
      %v999 = vmul.f32 %v593, 0.70710677
      %v1000 = vmul.f32 %v595, 0.70710677
      %v1001 = vmul.f32 %v781, 0.70710677
      %v1002 = vmul.f32 %v599, 0.70710677
      %v1003 = vmul.f32 %v601, 0.70710677
      %v1004 = vmul.f32 %v786, 0.70710677
      %v1005 = vmul.f32 %v603, 0.70710677
      %v1006 = vmul.f32 %v605, 0.70710677
      %v1007 = vmul.f32 %v789, 0.70710677
      %v1008 = vmul.f32 %v609, 0.70710677
      %v1009 = vmul.f32 %v611, 0.70710677
      %v1010 = vmul.f32 %v794, 0.70710677
      %v1011 = vmul.f32 %v613, 0.70710677
      %v1012 = vmul.f32 %v615, 0.70710677
      %v1013 = vmul.f32 %v797, 0.70710677
      %v1014 = vmul.f32 %v619, 0.70710677
      %v1015 = vmul.f32 %v621, 0.70710677
      %v1016 = vmul.f32 %v802, 0.70710677
      %v1017 = vmul.f32 %v623, 0.70710677
      %v1018 = vmul.f32 %v625, 0.70710677
      %v1019 = vmul.f32 %v805, 0.70710677
      %v1020 = vmul.f32 %v629, 0.70710677
      %v1021 = vmul.f32 %v631, 0.70710677
      %v1022 = vmul.f32 %v810, 0.70710677
      %v1023 = vmul.f32 %v633, 0.70710677
      %v1024 = vmul.f32 %v635, 0.70710677
      %v1025 = vmul.f32 %v813, 0.70710677
      %v1026 = vmul.f32 %v639, 0.70710677
      %v1027 = vmul.f32 %v641, 0.70710677
      %v1028 = vmul.f32 %v818, 0.70710677
      %v1029 = vmul.f32 %v643, 0.70710677
      %v1030 = vmul.f32 %v645, 0.70710677
      %v1031 = vmul.f32 %v821, 0.70710677
      %v1032 = vmul.f32 %v649, 0.70710677
      %v1033 = vmul.f32 %v651, 0.70710677
      %v1034 = vmul.f32 %v826, 0.70710677
      %v1035 = vmul.f32 %v653, 0.70710677
      %v1036 = vmul.f32 %v655, 0.70710677
      %v1037 = vmul.f32 %v829, 0.70710677
      %v1038 = vmul.f32 %v659, 0.70710677
      %v1039 = vmul.f32 %v661, 0.70710677
      %v1040 = vmul.f32 %v834, 0.70710677
      %v1041 = vmul.f32 %v663, 0.70710677
      %v1042 = vmul.f32 %v665, 0.70710677
      %v1043 = vmul.f32 %v837, 0.70710677
      %v1044 = vmul.f32 %v669, 0.70710677
      %v1045 = vmul.f32 %v671, 0.70710677
      %v1046 = vmul.f32 %v842, 0.70710677
      %v1047 = vmul.f32 %v673, 0.70710677
      %v1048 = vmul.f32 %v675, 0.70710677
      %v1049 = vmul.f32 %v845, 0.70710677
      %v1050 = vmul.f32 %v679, 0.70710677
      %v1051 = vmul.f32 %v681, 0.70710677
      %v1052 = vmul.f32 %v850, 0.70710677
      %v1053 = vmul.f32 %v683, 0.70710677
      %v1054 = vmul.f32 %v685, 0.70710677
      %v1055 = vmul.f32 %v853, 0.70710677
      %v1056 = vmul.f32 %v689, 0.70710677
      %v1057 = vmul.f32 %v691, 0.70710677
      %v1058 = vmul.f32 %v858, 0.70710677
      %v1059 = vmul.f32 %v693, 0.70710677
      %v1060 = vmul.f32 %v695, 0.70710677
      %v1061 = vmul.f32 %v861, 0.70710677
      %v1062 = vmul.f32 %v699, 0.70710677
      %v1063 = vmul.f32 %v701, 0.70710677
      %v1064 = vmul.f32 %v866, 0.70710677
      %v1065 = vmul.f32 %v703, 0.70710677
      %v1066 = vmul.f32 %v705, 0.70710677
      %v1067 = vmul.f32 %v869, 0.70710677
      %v1068 = vmul.f32 %v709, 0.70710677
      %v1069 = vmul.f32 %v711, 0.70710677
      %v1070 = vmul.f32 %v874, 0.70710677
      %v1071 = vmul.f32 %v713, 0.70710677
      %v1072 = vmul.f32 %v715, 0.70710677
      %v1073 = vmul.f32 %v877, 0.70710677
      %v1074 = vmul.f32 %v719, 0.70710677
      %v1075 = vmul.f32 %v721, 0.70710677
      %v1076 = vmul.f32 %v882, 0.70710677
      %v1077 = vmul.f32 %v723, 0.70710677
      %v1078 = vmul.f32 %v725, 0.70710677
      %v1079 = vmul.f32 %v885, 0.70710677
      %v1080 = verf.f32.pop %v984
      %v1081 = verf.f32.pop %v985
      %v1082 = verf.f32.pop %v986
      %v1083 = verf.f32.pop %v987
      %v1084 = verf.f32.pop %v988
      %v1085 = verf.f32.pop %v989
      %v1086 = verf.f32.pop %v990
      %v1087 = verf.f32.pop %v991
      %v1088 = verf.f32.pop %v992
      %v1089 = verf.f32.pop %v993
      %v1090 = verf.f32.pop %v994
      %v1091 = verf.f32.pop %v995
      %v1092 = verf.f32.pop %v996
      %v1093 = verf.f32.pop %v997
      %v1094 = verf.f32.pop %v998
      %v1095 = verf.f32.pop %v999
      %v1096 = verf.f32.pop %v1000
      %v1097 = verf.f32.pop %v1001
      %v1098 = verf.f32.pop %v1002
      %v1099 = verf.f32.pop %v1003
      %v1100 = verf.f32.pop %v1004
      %v1101 = verf.f32.pop %v1005
      %v1102 = verf.f32.pop %v1006
      %v1103 = verf.f32.pop %v1007
      %v1104 = verf.f32.pop %v1008
      %v1105 = verf.f32.pop %v1009
      %v1106 = verf.f32.pop %v1010
      %v1107 = verf.f32.pop %v1011
      %v1108 = verf.f32.pop %v1012
      %v1109 = verf.f32.pop %v1013
      %v1110 = verf.f32.pop %v1014
      %v1111 = verf.f32.pop %v1015
      %v1112 = verf.f32.pop %v1016
      %v1113 = verf.f32.pop %v1017
      %v1114 = verf.f32.pop %v1018
      %v1115 = verf.f32.pop %v1019
      %v1116 = verf.f32.pop %v1020
      %v1117 = verf.f32.pop %v1021
      %v1118 = verf.f32.pop %v1022
      %v1119 = verf.f32.pop %v1023
      %v1120 = verf.f32.pop %v1024
      %v1121 = verf.f32.pop %v1025
      %v1122 = verf.f32.pop %v1026
      %v1123 = verf.f32.pop %v1027
      %v1124 = verf.f32.pop %v1028
      %v1125 = verf.f32.pop %v1029
      %v1126 = verf.f32.pop %v1030
      %v1127 = verf.f32.pop %v1031
      %v1128 = verf.f32.pop %v1032
      %v1129 = verf.f32.pop %v1033
      %v1130 = verf.f32.pop %v1034
      %v1131 = verf.f32.pop %v1035
      %v1132 = verf.f32.pop %v1036
      %v1133 = verf.f32.pop %v1037
      %v1134 = verf.f32.pop %v1038
      %v1135 = verf.f32.pop %v1039
      %v1136 = verf.f32.pop %v1040
      %v1137 = verf.f32.pop %v1041
      %v1138 = verf.f32.pop %v1042
      %v1139 = verf.f32.pop %v1043
      %v1140 = verf.f32.pop %v1044
      %v1141 = verf.f32.pop %v1045
      %v1142 = verf.f32.pop %v1046
      %v1143 = verf.f32.pop %v1047
      %v1144 = verf.f32.pop %v1048
      %v1145 = verf.f32.pop %v1049
      %v1146 = verf.f32.pop %v1050
      %v1147 = verf.f32.pop %v1051
      %v1148 = verf.f32.pop %v1052
      %v1149 = verf.f32.pop %v1053
      %v1150 = verf.f32.pop %v1054
      %v1151 = verf.f32.pop %v1055
      %v1152 = verf.f32.pop %v1056
      %v1153 = verf.f32.pop %v1057
      %v1154 = verf.f32.pop %v1058
      %v1155 = verf.f32.pop %v1059
      %v1156 = verf.f32.pop %v1060
      %v1157 = verf.f32.pop %v1061
      %v1158 = verf.f32.pop %v1062
      %v1159 = verf.f32.pop %v1063
      %v1160 = verf.f32.pop %v1064
      %v1161 = verf.f32.pop %v1065
      %v1162 = verf.f32.pop %v1066
      %v1163 = verf.f32.pop %v1067
      %v1164 = verf.f32.pop %v1068
      %v1165 = verf.f32.pop %v1069
      %v1166 = verf.f32.pop %v1070
      %v1167 = verf.f32.pop %v1071
      %v1168 = verf.f32.pop %v1072
      %v1169 = verf.f32.pop %v1073
      %v1170 = verf.f32.pop %v1074
      %v1171 = verf.f32.pop %v1075
      %v1172 = verf.f32.pop %v1076
      %v1173 = verf.f32.pop %v1077
      %v1174 = verf.f32.pop %v1078
      %v1175 = verf.f32.pop %v1079
      %v1176 = vadd.f32 %v1080, 1.0
      %v1177 = vadd.f32 %v1081, 1.0
      %v1178 = vadd.f32 %v1082, 1.0
      %v1179 = vadd.f32 %v1083, 1.0
      %v1180 = vadd.f32 %v1084, 1.0
      %v1181 = vadd.f32 %v1085, 1.0
      %v1182 = vadd.f32 %v1086, 1.0
      %v1183 = vadd.f32 %v1087, 1.0
      %v1184 = vadd.f32 %v1088, 1.0
      %v1185 = vadd.f32 %v1089, 1.0
      %v1186 = vadd.f32 %v1090, 1.0
      %v1187 = vadd.f32 %v1091, 1.0
      %v1188 = vadd.f32 %v1092, 1.0
      %v1189 = vadd.f32 %v1093, 1.0
      %v1190 = vadd.f32 %v1094, 1.0
      %v1191 = vadd.f32 %v1095, 1.0
      %v1192 = vadd.f32 %v1096, 1.0
      %v1193 = vadd.f32 %v1097, 1.0
      %v1194 = vadd.f32 %v1098, 1.0
      %v1195 = vadd.f32 %v1099, 1.0
      %v1196 = vadd.f32 %v1100, 1.0
      %v1197 = vadd.f32 %v1101, 1.0
      %v1198 = vadd.f32 %v1102, 1.0
      %v1199 = vadd.f32 %v1103, 1.0
      %v1200 = vadd.f32 %v1104, 1.0
      %v1201 = vadd.f32 %v1105, 1.0
      %v1202 = vadd.f32 %v1106, 1.0
      %v1203 = vadd.f32 %v1107, 1.0
      %v1204 = vadd.f32 %v1108, 1.0
      %v1205 = vadd.f32 %v1109, 1.0
      %v1206 = vadd.f32 %v1110, 1.0
      %v1207 = vadd.f32 %v1111, 1.0
      %v1208 = vadd.f32 %v1112, 1.0
      %v1209 = vadd.f32 %v1113, 1.0
      %v1210 = vadd.f32 %v1114, 1.0
      %v1211 = vadd.f32 %v1115, 1.0
      %v1212 = vadd.f32 %v1116, 1.0
      %v1213 = vadd.f32 %v1117, 1.0
      %v1214 = vadd.f32 %v1118, 1.0
      %v1215 = vadd.f32 %v1119, 1.0
      %v1216 = vadd.f32 %v1120, 1.0
      %v1217 = vadd.f32 %v1121, 1.0
      %v1218 = vadd.f32 %v1122, 1.0
      %v1219 = vadd.f32 %v1123, 1.0
      %v1220 = vadd.f32 %v1124, 1.0
      %v1221 = vadd.f32 %v1125, 1.0
      %v1222 = vadd.f32 %v1126, 1.0
      %v1223 = vadd.f32 %v1127, 1.0
      %v1224 = vadd.f32 %v1128, 1.0
      %v1225 = vadd.f32 %v1129, 1.0
      %v1226 = vadd.f32 %v1130, 1.0
      %v1227 = vadd.f32 %v1131, 1.0
      %v1228 = vadd.f32 %v1132, 1.0
      %v1229 = vadd.f32 %v1133, 1.0
      %v1230 = vadd.f32 %v1134, 1.0
      %v1231 = vadd.f32 %v1135, 1.0
      %v1232 = vadd.f32 %v1136, 1.0
      %v1233 = vadd.f32 %v1137, 1.0
      %v1234 = vadd.f32 %v1138, 1.0
      %v1235 = vadd.f32 %v1139, 1.0
      %v1236 = vadd.f32 %v1140, 1.0
      %v1237 = vadd.f32 %v1141, 1.0
      %v1238 = vadd.f32 %v1142, 1.0
      %v1239 = vadd.f32 %v1143, 1.0
      %v1240 = vadd.f32 %v1144, 1.0
      %v1241 = vadd.f32 %v1145, 1.0
      %v1242 = vadd.f32 %v1146, 1.0
      %v1243 = vadd.f32 %v1147, 1.0
      %v1244 = vadd.f32 %v1148, 1.0
      %v1245 = vadd.f32 %v1149, 1.0
      %v1246 = vadd.f32 %v1150, 1.0
      %v1247 = vadd.f32 %v1151, 1.0
      %v1248 = vadd.f32 %v1152, 1.0
      %v1249 = vadd.f32 %v1153, 1.0
      %v1250 = vadd.f32 %v1154, 1.0
      %v1251 = vadd.f32 %v1155, 1.0
      %v1252 = vadd.f32 %v1156, 1.0
      %v1253 = vadd.f32 %v1157, 1.0
      %v1254 = vadd.f32 %v1158, 1.0
      %v1255 = vadd.f32 %v1159, 1.0
      %v1256 = vadd.f32 %v1160, 1.0
      %v1257 = vadd.f32 %v1161, 1.0
      %v1258 = vadd.f32 %v1162, 1.0
      %v1259 = vadd.f32 %v1163, 1.0
      %v1260 = vadd.f32 %v1164, 1.0
      %v1261 = vadd.f32 %v1165, 1.0
      %v1262 = vadd.f32 %v1166, 1.0
      %v1263 = vadd.f32 %v1167, 1.0
      %v1264 = vadd.f32 %v1168, 1.0
      %v1265 = vadd.f32 %v1169, 1.0
      %v1266 = vadd.f32 %v1170, 1.0
      %v1267 = vadd.f32 %v1171, 1.0
      %v1268 = vadd.f32 %v1172, 1.0
      %v1269 = vadd.f32 %v1173, 1.0
      %v1270 = vadd.f32 %v1174, 1.0
      %v1271 = vadd.f32 %v1175, 1.0
      %v1272 = vmul.f32 %v888, %v1176
      %v1273 = vmul.f32 %v889, %v1177
      %v1274 = vmul.f32 %v890, %v1178
      %v1275 = vmul.f32 %v891, %v1179
      %v1276 = vmul.f32 %v892, %v1180
      %v1277 = vmul.f32 %v893, %v1181
      %v1278 = vmul.f32 %v894, %v1182
      %v1279 = vmul.f32 %v895, %v1183
      %v1280 = vmul.f32 %v896, %v1184
      %v1281 = vmul.f32 %v897, %v1185
      %v1282 = vmul.f32 %v898, %v1186
      %v1283 = vmul.f32 %v899, %v1187
      %v1284 = vmul.f32 %v900, %v1188
      %v1285 = vmul.f32 %v901, %v1189
      %v1286 = vmul.f32 %v902, %v1190
      %v1287 = vmul.f32 %v903, %v1191
      %v1288 = vmul.f32 %v904, %v1192
      %v1289 = vmul.f32 %v905, %v1193
      %v1290 = vmul.f32 %v906, %v1194
      %v1291 = vmul.f32 %v907, %v1195
      %v1292 = vmul.f32 %v908, %v1196
      %v1293 = vmul.f32 %v909, %v1197
      %v1294 = vmul.f32 %v910, %v1198
      %v1295 = vmul.f32 %v911, %v1199
      %v1296 = vmul.f32 %v912, %v1200
      %v1297 = vmul.f32 %v913, %v1201
      %v1298 = vmul.f32 %v914, %v1202
      %v1299 = vmul.f32 %v915, %v1203
      %v1300 = vmul.f32 %v916, %v1204
      %v1301 = vmul.f32 %v917, %v1205
      %v1302 = vmul.f32 %v918, %v1206
      %v1303 = vmul.f32 %v919, %v1207
      %v1304 = vmul.f32 %v920, %v1208
      %v1305 = vmul.f32 %v921, %v1209
      %v1306 = vmul.f32 %v922, %v1210
      %v1307 = vmul.f32 %v923, %v1211
      %v1308 = vmul.f32 %v924, %v1212
      %v1309 = vmul.f32 %v925, %v1213
      %v1310 = vmul.f32 %v926, %v1214
      %v1311 = vmul.f32 %v927, %v1215
      %v1312 = vmul.f32 %v928, %v1216
      %v1313 = vmul.f32 %v929, %v1217
      %v1314 = vmul.f32 %v930, %v1218
      %v1315 = vmul.f32 %v931, %v1219
      %v1316 = vmul.f32 %v932, %v1220
      %v1317 = vmul.f32 %v933, %v1221
      %v1318 = vmul.f32 %v934, %v1222
      %v1319 = vmul.f32 %v935, %v1223
      %v1320 = vmul.f32 %v936, %v1224
      %v1321 = vmul.f32 %v937, %v1225
      %v1322 = vmul.f32 %v938, %v1226
      %v1323 = vmul.f32 %v939, %v1227
      %v1324 = vmul.f32 %v940, %v1228
      %v1325 = vmul.f32 %v941, %v1229
      %v1326 = vmul.f32 %v942, %v1230
      %v1327 = vmul.f32 %v943, %v1231
      %v1328 = vmul.f32 %v944, %v1232
      %v1329 = vmul.f32 %v945, %v1233
      %v1330 = vmul.f32 %v946, %v1234
      %v1331 = vmul.f32 %v947, %v1235
      %v1332 = vmul.f32 %v948, %v1236
      %v1333 = vmul.f32 %v949, %v1237
      %v1334 = vmul.f32 %v950, %v1238
      %v1335 = vmul.f32 %v951, %v1239
      %v1336 = vmul.f32 %v952, %v1240
      %v1337 = vmul.f32 %v953, %v1241
      %v1338 = vmul.f32 %v954, %v1242
      %v1339 = vmul.f32 %v955, %v1243
      %v1340 = vmul.f32 %v956, %v1244
      %v1341 = vmul.f32 %v957, %v1245
      %v1342 = vmul.f32 %v958, %v1246
      %v1343 = vmul.f32 %v959, %v1247
      %v1344 = vmul.f32 %v960, %v1248
      %v1345 = vmul.f32 %v961, %v1249
      %v1346 = vmul.f32 %v962, %v1250
      %v1347 = vmul.f32 %v963, %v1251
      %v1348 = vmul.f32 %v964, %v1252
      %v1349 = vmul.f32 %v965, %v1253
      %v1350 = vmul.f32 %v966, %v1254
      %v1351 = vmul.f32 %v967, %v1255
      %v1352 = vmul.f32 %v968, %v1256
      %v1353 = vmul.f32 %v969, %v1257
      %v1354 = vmul.f32 %v970, %v1258
      %v1355 = vmul.f32 %v971, %v1259
      %v1356 = vmul.f32 %v972, %v1260
      %v1357 = vmul.f32 %v973, %v1261
      %v1358 = vmul.f32 %v974, %v1262
      %v1359 = vmul.f32 %v975, %v1263
      %v1360 = vmul.f32 %v976, %v1264
      %v1361 = vmul.f32 %v977, %v1265
      %v1362 = vmul.f32 %v978, %v1266
      %v1363 = vmul.f32 %v979, %v1267
      %v1364 = vmul.f32 %v980, %v1268
      %v1365 = vmul.f32 %v981, %v1269
      %v1366 = vmul.f32 %v982, %v1270
      %v1367 = vmul.f32 %v983, %v1271
      %v1368 = vpack.c.bf16 %v1275, %v1272
      %v1369 = vpack.c.bf16 %v1276, %v1273
      %v1370 = vpack.c.bf16 %v1277, %v1274
      %v1371 = vpack.c.bf16 %v1281, %v1278
      %v1372 = vpack.c.bf16 %v1282, %v1279
      %v1373 = vpack.c.bf16 %v1283, %v1280
      %v1374 = vpack.c.bf16 %v1287, %v1284
      %v1375 = vpack.c.bf16 %v1288, %v1285
      %v1376 = vpack.c.bf16 %v1289, %v1286
      %v1377 = vpack.c.bf16 %v1293, %v1290
      %v1378 = vpack.c.bf16 %v1294, %v1291
      %v1379 = vpack.c.bf16 %v1295, %v1292
      %v1380 = vpack.c.bf16 %v1299, %v1296
      %v1381 = vpack.c.bf16 %v1300, %v1297
      %v1382 = vpack.c.bf16 %v1301, %v1298
      %v1383 = vpack.c.bf16 %v1305, %v1302
      %v1384 = vpack.c.bf16 %v1306, %v1303
      %v1385 = vpack.c.bf16 %v1307, %v1304
      %v1386 = vpack.c.bf16 %v1311, %v1308
      %v1387 = vpack.c.bf16 %v1312, %v1309
      %v1388 = vpack.c.bf16 %v1313, %v1310
      %v1389 = vpack.c.bf16 %v1317, %v1314
      %v1390 = vpack.c.bf16 %v1318, %v1315
      %v1391 = vpack.c.bf16 %v1319, %v1316
      %v1392 = vpack.c.bf16 %v1323, %v1320
      %v1393 = vpack.c.bf16 %v1324, %v1321
      %v1394 = vpack.c.bf16 %v1325, %v1322
      %v1395 = vpack.c.bf16 %v1329, %v1326
      %v1396 = vpack.c.bf16 %v1330, %v1327
      %v1397 = vpack.c.bf16 %v1331, %v1328
      %v1398 = vpack.c.bf16 %v1335, %v1332
      %v1399 = vpack.c.bf16 %v1336, %v1333
      %v1400 = vpack.c.bf16 %v1337, %v1334
      %v1401 = vpack.c.bf16 %v1341, %v1338
      %v1402 = vpack.c.bf16 %v1342, %v1339
      %v1403 = vpack.c.bf16 %v1343, %v1340
      %v1404 = vpack.c.bf16 %v1347, %v1344
      %v1405 = vpack.c.bf16 %v1348, %v1345
      %v1406 = vpack.c.bf16 %v1349, %v1346
      %v1407 = vpack.c.bf16 %v1353, %v1350
      %v1408 = vpack.c.bf16 %v1354, %v1351
      %v1409 = vpack.c.bf16 %v1355, %v1352
      %v1410 = vpack.c.bf16 %v1359, %v1356
      %v1411 = vpack.c.bf16 %v1360, %v1357
      %v1412 = vpack.c.bf16 %v1361, %v1358
      %v1413 = vpack.c.bf16 %v1365, %v1362
      %v1414 = vpack.c.bf16 %v1366, %v1363
      %v1415 = vpack.c.bf16 %v1367, %v1364
      %v1416 = vld [vmem:[%s3] sm:$0xf]
      %v1417 = vld [vmem:[%s3 + $0x4] sm:$0xf]
      %v1418 = vld [vmem:[%s3 + $0x8] sm:$0xf]
      %v1419 = vld [vmem:[%s3 + $0xc] sm:$0xf]
      %v1420 = vld [vmem:[%s3 + $0x10] sm:$0xf]
      %v1421 = vld [vmem:[%s3 + $0x14] sm:$0xf]
      %v1422 = vld [vmem:[%s3 + $0x18] sm:$0xf]
      %v1423 = vld [vmem:[%s3 + $0x1c] sm:$0xf]
      %v1424 = vld [vmem:[%s3 + $0x20] sm:$0xf]
      %v1425 = vld [vmem:[%s3 + $0x24] sm:$0xf]
      %v1426 = vld [vmem:[%s3 + $0x28] sm:$0xf]
      %v1427 = vld [vmem:[%s3 + $0x2c] sm:$0xf]
      %v1428 = vld [vmem:[%s3 + $0x30] sm:$0xf]
      %v1429 = vld [vmem:[%s3 + $0x34] sm:$0xf]
      %v1430 = vld [vmem:[%s3 + $0x38] sm:$0xf]
      %v1431 = vld [vmem:[%s3 + $0x3c] sm:$0xf]
      %v1432 = vld [vmem:[%s3 + $0x40] sm:$0xf]
      %v1433 = vld [vmem:[%s3 + $0x44] sm:$0xf]
      %v1434 = vld [vmem:[%s3 + $0x48] sm:$0xf]
      %v1435 = vld [vmem:[%s3 + $0x4c] sm:$0xf]
      %v1436 = vld [vmem:[%s3 + $0x50] sm:$0xf]
      %v1437 = vld [vmem:[%s3 + $0x54] sm:$0xf]
      %v1438 = vld [vmem:[%s3 + $0x58] sm:$0xf]
      %v1439 = vld [vmem:[%s3 + $0x5c] sm:$0xf]
      %v1440 = vld [vmem:[%s3 + $0x60] sm:$0xf]
      %v1441 = vld [vmem:[%s3 + $0x64] sm:$0xf]
      %v1442 = vld [vmem:[%s3 + $0x68] sm:$0xf]
      %v1443 = vld [vmem:[%s3 + $0x6c] sm:$0xf]
      %v1444 = vld [vmem:[%s3 + $0x70] sm:$0xf]
      %v1445 = vld [vmem:[%s3 + $0x74] sm:$0xf]
      %v1446 = vld [vmem:[%s3 + $0x78] sm:$0xf]
      %v1447 = vld [vmem:[%s3 + $0x7c] sm:$0xf]
      %v1448 = vld [vmem:[%s3 + $0x80] sm:$0xf]
      %v1449 = vld [vmem:[%s3 + $0x84] sm:$0xf]
      %v1450 = vld [vmem:[%s3 + $0x88] sm:$0xf]
      %v1451 = vld [vmem:[%s3 + $0x8c] sm:$0xf]
      %v1452 = vld [vmem:[%s3 + $0x90] sm:$0xf]
      %v1453 = vld [vmem:[%s3 + $0x94] sm:$0xf]
      %v1454 = vld [vmem:[%s3 + $0x98] sm:$0xf]
      %v1455 = vld [vmem:[%s3 + $0x9c] sm:$0xf]
      %v1456 = vld [vmem:[%s3 + $0xa0] sm:$0xf]
      %v1457 = vld [vmem:[%s3 + $0xa4] sm:$0xf]
      %v1458 = vld [vmem:[%s3 + $0xa8] sm:$0xf]
      %v1459 = vld [vmem:[%s3 + $0xac] sm:$0xf]
      %v1460 = vld [vmem:[%s3 + $0xb0] sm:$0xf]
      %v1461 = vld [vmem:[%s3 + $0xb4] sm:$0xf]
      %v1462 = vld [vmem:[%s3 + $0xb8] sm:$0xf]
      %v1463 = vld [vmem:[%s3 + $0xbc] sm:$0xf]
      %v1464 = vld [vmem:[%s4] sm:$0x1]
      %v1466 = vlaneseq
      %v1467 = vshrl.u32 %v1466, 7
      %v1468 = vsub.s32 0, %v1467
      %v1469 = vrot.slane %v1464, %v1468
      %v1519 = vunpack.c.l.b16 %v1416
      %v1520 = vunpack.c.l.b16 %v1417
      %v1521 = vunpack.c.l.b16 %v1418
      %v1522 = vunpack.c.l.b16 %v1419
      %v1523 = vunpack.c.l.b16 %v1420
      %v1524 = vunpack.c.l.b16 %v1421
      %v1525 = vunpack.c.l.b16 %v1422
      %v1526 = vunpack.c.l.b16 %v1423
      %v1527 = vunpack.c.l.b16 %v1424
      %v1528 = vunpack.c.l.b16 %v1425
      %v1529 = vunpack.c.l.b16 %v1426
      %v1530 = vunpack.c.l.b16 %v1427
      %v1531 = vunpack.c.l.b16 %v1428
      %v1532 = vunpack.c.l.b16 %v1429
      %v1533 = vunpack.c.l.b16 %v1430
      %v1534 = vunpack.c.l.b16 %v1431
      %v1535 = vunpack.c.l.b16 %v1432
      %v1536 = vunpack.c.l.b16 %v1433
      %v1537 = vunpack.c.l.b16 %v1434
      %v1538 = vunpack.c.l.b16 %v1435
      %v1539 = vunpack.c.l.b16 %v1436
      %v1540 = vunpack.c.l.b16 %v1437
      %v1541 = vunpack.c.l.b16 %v1438
      %v1542 = vunpack.c.l.b16 %v1439
      %v1543 = vunpack.c.l.b16 %v1440
      %v1544 = vunpack.c.l.b16 %v1441
      %v1545 = vunpack.c.l.b16 %v1442
      %v1546 = vunpack.c.l.b16 %v1443
      %v1547 = vunpack.c.l.b16 %v1444
      %v1548 = vunpack.c.l.b16 %v1445
      %v1549 = vunpack.c.l.b16 %v1446
      %v1550 = vunpack.c.l.b16 %v1447
      %v1551 = vunpack.c.l.b16 %v1448
      %v1552 = vunpack.c.l.b16 %v1449
      %v1553 = vunpack.c.l.b16 %v1450
      %v1554 = vunpack.c.l.b16 %v1451
      %v1555 = vunpack.c.l.b16 %v1452
      %v1556 = vunpack.c.l.b16 %v1453
      %v1557 = vunpack.c.l.b16 %v1454
      %v1558 = vunpack.c.l.b16 %v1455
      %v1559 = vunpack.c.l.b16 %v1456
      %v1560 = vunpack.c.l.b16 %v1457
      %v1561 = vunpack.c.l.b16 %v1458
      %v1562 = vunpack.c.l.b16 %v1459
      %v1563 = vunpack.c.l.b16 %v1460
      %v1564 = vunpack.c.l.b16 %v1461
      %v1565 = vunpack.c.l.b16 %v1462
      %v1566 = vunpack.c.l.b16 %v1463
      %v1567 = vpack.c.b16 %v1520, %v1519
      %v1568 = vpack.c.b16 %v1522, %v1521
      %v1569 = vpack.c.b16 %v1524, %v1523
      %v1570 = vpack.c.b16 %v1526, %v1525
      %v1571 = vpack.c.b16 %v1528, %v1527
      %v1572 = vpack.c.b16 %v1530, %v1529
      %v1573 = vpack.c.b16 %v1532, %v1531
      %v1574 = vpack.c.b16 %v1534, %v1533
      %v1575 = vpack.c.b16 %v1536, %v1535
      %v1576 = vpack.c.b16 %v1538, %v1537
      %v1577 = vpack.c.b16 %v1540, %v1539
      %v1578 = vpack.c.b16 %v1542, %v1541
      %v1579 = vpack.c.b16 %v1544, %v1543
      %v1580 = vpack.c.b16 %v1546, %v1545
      %v1581 = vpack.c.b16 %v1548, %v1547
      %v1582 = vpack.c.b16 %v1550, %v1549
      %v1583 = vpack.c.b16 %v1552, %v1551
      %v1584 = vpack.c.b16 %v1554, %v1553
      %v1585 = vpack.c.b16 %v1556, %v1555
      %v1586 = vpack.c.b16 %v1558, %v1557
      %v1587 = vpack.c.b16 %v1560, %v1559
      %v1588 = vpack.c.b16 %v1562, %v1561
      %v1589 = vpack.c.b16 %v1564, %v1563
      %v1590 = vpack.c.b16 %v1566, %v1565
      %1615 = vmatprep.subr.bf16.mxu0 0
      %1616 = vmatpush1.bf16.msra.mxu0 %v1567
      %1617 = vmatprep.subr.bf16.mxu0 0
      %1618 = vmatpush1.bf16.msra.mxu0 %v1568
      %1619 = vmatprep.subr.bf16.mxu0 0
      %1620 = vmatpush1.bf16.msra.mxu0 %v1569
      %1621 = vmatprep.subr.bf16.mxu0 0
      %1622 = vmatpush1.bf16.msra.mxu0 %v1570
      %1623 = vmatprep.subr.bf16.mxu0 0
      %1624 = vmatpush1.bf16.msra.mxu0 %v1571
      %1625 = vmatprep.subr.bf16.mxu0 0
      %1626 = vmatpush1.bf16.msra.mxu0 %v1572
      %1627 = vmatprep.subr.bf16.mxu0 0
      %1628 = vmatpush1.bf16.msra.mxu0 %v1573
      %1629 = vmatprep.subr.bf16.mxu0 0
      %1630 = vmatpush1.bf16.msra.mxu0 %v1574
      %1631 = vmatprep.subr.bf16.mxu0 0
      %1632 = vmatpush1.bf16.msra.mxu0 %v1575
      %1633 = vmatprep.subr.bf16.mxu0 0
      %1634 = vmatpush1.bf16.msra.mxu0 %v1576
      %1635 = vmatprep.subr.bf16.mxu0 0
      %1636 = vmatpush1.bf16.msra.mxu0 %v1577
      %1637 = vmatprep.subr.bf16.mxu0 0
      %1638 = vmatpush1.bf16.msra.mxu0 %v1578
      %1639 = vmatprep.subr.bf16.mxu0 0
      %1640 = vmatpush1.bf16.msra.mxu0 %v1579
      %1641 = vmatprep.subr.bf16.mxu0 0
      %1642 = vmatpush1.bf16.msra.mxu0 %v1580
      %1643 = vmatprep.subr.bf16.mxu0 0
      %1644 = vmatpush1.bf16.msra.mxu0 %v1581
      %1645 = vmatprep.subr.bf16.mxu0 0
      %1646 = vmatpush1.bf16.msra.mxu0 %v1582
      %1647 = vmatprep.mubr.bf16.mxu0 %v1369
      %1648 = vmatmul.mubr.bf16.gmra.mrb[0].mxu0 %v1368
      %v1649 = vpop.f32.mrb[0].mxu0
      %v1650 = vadd.f32 %v1469, %v1649
      %v1651 = vpop.f32.mrb[0].mxu0
      %v1652 = vpop.f32.mrb[0].mxu0
      %v1653 = vadd.f32 %v1469, %v1652
      %v1654 = vpop.f32.mrb[0].mxu0
      %1655 = vmatprep.mubr.bf16.mxu0 %v1372
      %1656 = vmatmul.mubr.bf16.gmra.mrb[0].mxu0 %v1371
      %v1657 = vpop.f32.mrb[0].mxu0
      %v1658 = vadd.f32 %v1469, %v1657
      %v1659 = vpop.f32.mrb[0].mxu0
      %v1660 = vpop.f32.mrb[0].mxu0
      %v1661 = vadd.f32 %v1469, %v1660
      %v1662 = vpop.f32.mrb[0].mxu0
      %1663 = vmatprep.mubr.bf16.mxu0 %v1375
      %1664 = vmatmul.mubr.bf16.gmra.mrb[0].mxu0 %v1374
      %v1665 = vpop.f32.mrb[0].mxu0
      %v1666 = vadd.f32 %v1469, %v1665
      %v1667 = vpop.f32.mrb[0].mxu0
      %v1668 = vpop.f32.mrb[0].mxu0
      %v1669 = vadd.f32 %v1469, %v1668
      %v1670 = vpop.f32.mrb[0].mxu0
      %1671 = vmatprep.mubr.bf16.mxu0 %v1378
      %1672 = vmatmul.mubr.bf16.gmra.mrb[0].mxu0 %v1377
      %v1673 = vpop.f32.mrb[0].mxu0
      %v1674 = vadd.f32 %v1469, %v1673
      %v1675 = vpop.f32.mrb[0].mxu0
      %v1676 = vpop.f32.mrb[0].mxu0
      %v1677 = vadd.f32 %v1469, %v1676
      %v1678 = vpop.f32.mrb[0].mxu0
      %1679 = vmatprep.mubr.bf16.mxu0 %v1381
      %1680 = vmatmul.mubr.bf16.gmra.mrb[0].mxu0 %v1380
      %v1681 = vpop.f32.mrb[0].mxu0
      %v1682 = vadd.f32 %v1469, %v1681
      %v1683 = vpop.f32.mrb[0].mxu0
      %v1684 = vpop.f32.mrb[0].mxu0
      %v1685 = vadd.f32 %v1469, %v1684
      %v1686 = vpop.f32.mrb[0].mxu0
      %1687 = vmatprep.mubr.bf16.mxu0 %v1384
      %1688 = vmatmul.mubr.bf16.gmra.mrb[0].mxu0 %v1383
      %v1689 = vpop.f32.mrb[0].mxu0
      %v1690 = vadd.f32 %v1469, %v1689
      %v1691 = vpop.f32.mrb[0].mxu0
      %v1692 = vpop.f32.mrb[0].mxu0
      %v1693 = vadd.f32 %v1469, %v1692
      %v1694 = vpop.f32.mrb[0].mxu0
      %1695 = vmatprep.mubr.bf16.mxu0 %v1387
      %1696 = vmatmul.mubr.bf16.gmra.mrb[0].mxu0 %v1386
      %v1697 = vpop.f32.mrb[0].mxu0
      %v1698 = vadd.f32 %v1469, %v1697
      %v1699 = vpop.f32.mrb[0].mxu0
      %v1700 = vpop.f32.mrb[0].mxu0
      %v1701 = vadd.f32 %v1469, %v1700
      %v1702 = vpop.f32.mrb[0].mxu0
      %1703 = vmatprep.mubr.bf16.mxu0 %v1390
      %1704 = vmatmul.mubr.bf16.gmra.mrb[0].mxu0 %v1389
      %v1705 = vpop.f32.mrb[0].mxu0
      %v1706 = vadd.f32 %v1469, %v1705
      %v1707 = vpop.f32.mrb[0].mxu0
      %v1708 = vpop.f32.mrb[0].mxu0
      %v1709 = vadd.f32 %v1469, %v1708
      %v1710 = vpop.f32.mrb[0].mxu0
      %1711 = vmatprep.mubr.bf16.mxu0 %v1393
      %1712 = vmatmul.mubr.bf16.gmra.mrb[0].mxu0 %v1392
      %v1713 = vpop.f32.mrb[0].mxu0
      %v1714 = vadd.f32 %v1469, %v1713
      %v1715 = vpop.f32.mrb[0].mxu0
      %v1716 = vpop.f32.mrb[0].mxu0
      %v1717 = vadd.f32 %v1469, %v1716
      %v1718 = vpop.f32.mrb[0].mxu0
      %1719 = vmatprep.mubr.bf16.mxu0 %v1396
      %1720 = vmatmul.mubr.bf16.gmra.mrb[0].mxu0 %v1395
      %v1721 = vpop.f32.mrb[0].mxu0
      %v1722 = vadd.f32 %v1469, %v1721
      %v1723 = vpop.f32.mrb[0].mxu0
      %v1724 = vpop.f32.mrb[0].mxu0
      %v1725 = vadd.f32 %v1469, %v1724
      %v1726 = vpop.f32.mrb[0].mxu0
      %1727 = vmatprep.mubr.bf16.mxu0 %v1399
      %1728 = vmatmul.mubr.bf16.gmra.mrb[0].mxu0 %v1398
      %v1729 = vpop.f32.mrb[0].mxu0
      %v1730 = vadd.f32 %v1469, %v1729
      %v1731 = vpop.f32.mrb[0].mxu0
      %v1732 = vpop.f32.mrb[0].mxu0
      %v1733 = vadd.f32 %v1469, %v1732
      %v1734 = vpop.f32.mrb[0].mxu0
      %1735 = vmatprep.mubr.bf16.mxu0 %v1402
      %1736 = vmatmul.mubr.bf16.gmra.mrb[0].mxu0 %v1401
      %v1737 = vpop.f32.mrb[0].mxu0
      %v1738 = vadd.f32 %v1469, %v1737
      %v1739 = vpop.f32.mrb[0].mxu0
      %v1740 = vpop.f32.mrb[0].mxu0
      %v1741 = vadd.f32 %v1469, %v1740
      %v1742 = vpop.f32.mrb[0].mxu0
      %1743 = vmatprep.mubr.bf16.mxu0 %v1405
      %1744 = vmatmul.mubr.bf16.gmra.mrb[0].mxu0 %v1404
      %v1745 = vpop.f32.mrb[0].mxu0
      %v1746 = vadd.f32 %v1469, %v1745
      %v1747 = vpop.f32.mrb[0].mxu0
      %v1748 = vpop.f32.mrb[0].mxu0
      %v1749 = vadd.f32 %v1469, %v1748
      %v1750 = vpop.f32.mrb[0].mxu0
      %1751 = vmatprep.mubr.bf16.mxu0 %v1408
      %1752 = vmatmul.mubr.bf16.gmra.mrb[0].mxu0 %v1407
      %v1753 = vpop.f32.mrb[0].mxu0
      %v1754 = vadd.f32 %v1469, %v1753
      %v1755 = vpop.f32.mrb[0].mxu0
      %v1756 = vpop.f32.mrb[0].mxu0
      %v1757 = vadd.f32 %v1469, %v1756
      %v1758 = vpop.f32.mrb[0].mxu0
      %1759 = vmatprep.mubr.bf16.mxu0 %v1411
      %1760 = vmatmul.mubr.bf16.gmra.mrb[0].mxu0 %v1410
      %v1761 = vpop.f32.mrb[0].mxu0
      %v1762 = vadd.f32 %v1469, %v1761
      %v1763 = vpop.f32.mrb[0].mxu0
      %v1764 = vpop.f32.mrb[0].mxu0
      %v1765 = vadd.f32 %v1469, %v1764
      %v1766 = vpop.f32.mrb[0].mxu0
      %1767 = vmatprep.mubr.bf16.mxu0 %v1414
      %1768 = vmatmul.mubr.bf16.gmra.mrb[0].mxu0 %v1413
      %v1769 = vpop.f32.mrb[0].mxu0
      %v1770 = vadd.f32 %v1469, %v1769
      %v1771 = vpop.f32.mrb[0].mxu0
      %v1772 = vpop.f32.mrb[0].mxu0
      %v1773 = vadd.f32 %v1469, %v1772
      %v1774 = vpop.f32.mrb[0].mxu0
      %1775 = vdwg.mxu0
      %1776 = vmatprep.subr.bf16.mxu0 0
      %1777 = vmatpush1.bf16.msra.mxu0 %v1583
      %1778 = vmatprep.subr.bf16.mxu0 0
      %1779 = vmatpush1.bf16.msra.mxu0 %v1584
      %1780 = vmatprep.subr.bf16.mxu0 0
      %1781 = vmatpush1.bf16.msra.mxu0 %v1585
      %1782 = vmatprep.subr.bf16.mxu0 0
      %1783 = vmatpush1.bf16.msra.mxu0 %v1586
      %1784 = vmatprep.subr.bf16.mxu0 0
      %1785 = vmatpush1.bf16.msra.mxu0 %v1587
      %1786 = vmatprep.subr.bf16.mxu0 0
      %1787 = vmatpush1.bf16.msra.mxu0 %v1588
      %1788 = vmatprep.subr.bf16.mxu0 0
      %1789 = vmatpush1.bf16.msra.mxu0 %v1589
      %1790 = vmatprep.subr.bf16.mxu0 0
      %1791 = vmatpush1.bf16.msra.mxu0 %v1590
      %1792 = vmatprep.subr.bf16.mxu0 0
      %1793 = vmatpush1.bf16.msra.mxu0 0
      %1794 = vmatprep.subr.bf16.mxu0 0
      %1795 = vmatpush1.bf16.msra.mxu0 0
      %1796 = vmatprep.subr.bf16.mxu0 0
      %1797 = vmatpush1.bf16.msra.mxu0 0
      %1798 = vmatprep.subr.bf16.mxu0 0
      %1799 = vmatpush1.bf16.msra.mxu0 0
      %1800 = vmatprep.subr.bf16.mxu0 0
      %1801 = vmatpush1.bf16.msra.mxu0 0
      %1802 = vmatprep.subr.bf16.mxu0 0
      %1803 = vmatpush1.bf16.msra.mxu0 0
      %1804 = vmatprep.subr.bf16.mxu0 0
      %1805 = vmatpush1.bf16.msra.mxu0 0
      %1806 = vmatprep.subr.bf16.mxu0 0
      %1807 = vmatpush1.bf16.msra.mxu0 0
      %1808 = vmatprep.mubr.bf16.mxu0 0
      %1809 = vmatmul.mubr.bf16.gmra.mrb[0].mxu0 %v1370
      %v1810 = vpop.f32.mrb[0].mxu0
      %v1811 = vadd.f32 %v1650, %v1810
      %v1812 = vpop.f32.mrb[0].mxu0
      %v1813 = vpop.f32.mrb[0].mxu0
      %v1814 = vadd.f32 %v1653, %v1813
      %v1815 = vpop.f32.mrb[0].mxu0
      %1816 = vmatprep.mubr.bf16.mxu0 0
      %1817 = vmatmul.mubr.bf16.gmra.mrb[0].mxu0 %v1373
      %v1818 = vpop.f32.mrb[0].mxu0
      %v1819 = vadd.f32 %v1658, %v1818
      %v1820 = vpop.f32.mrb[0].mxu0
      %v1821 = vpop.f32.mrb[0].mxu0
      %v1822 = vadd.f32 %v1661, %v1821
      %v1823 = vpop.f32.mrb[0].mxu0
      %1824 = vmatprep.mubr.bf16.mxu0 0
      %1825 = vmatmul.mubr.bf16.gmra.mrb[0].mxu0 %v1376
      %v1826 = vpop.f32.mrb[0].mxu0
      %v1827 = vadd.f32 %v1666, %v1826
      %v1828 = vpop.f32.mrb[0].mxu0
      %v1829 = vpop.f32.mrb[0].mxu0
      %v1830 = vadd.f32 %v1669, %v1829
      %v1831 = vpop.f32.mrb[0].mxu0
      %1832 = vmatprep.mubr.bf16.mxu0 0
      %1833 = vmatmul.mubr.bf16.gmra.mrb[0].mxu0 %v1379
      %v1834 = vpop.f32.mrb[0].mxu0
      %v1835 = vadd.f32 %v1674, %v1834
      %v1836 = vpop.f32.mrb[0].mxu0
      %v1837 = vpop.f32.mrb[0].mxu0
      %v1838 = vadd.f32 %v1677, %v1837
      %v1839 = vpop.f32.mrb[0].mxu0
      %1840 = vmatprep.mubr.bf16.mxu0 0
      %1841 = vmatmul.mubr.bf16.gmra.mrb[0].mxu0 %v1382
      %v1842 = vpop.f32.mrb[0].mxu0
      %v1843 = vadd.f32 %v1682, %v1842
      %v1844 = vpop.f32.mrb[0].mxu0
      %v1845 = vpop.f32.mrb[0].mxu0
      %v1846 = vadd.f32 %v1685, %v1845
      %v1847 = vpop.f32.mrb[0].mxu0
      %1848 = vmatprep.mubr.bf16.mxu0 0
      %1849 = vmatmul.mubr.bf16.gmra.mrb[0].mxu0 %v1385
      %v1850 = vpop.f32.mrb[0].mxu0
      %v1851 = vadd.f32 %v1690, %v1850
      %v1852 = vpop.f32.mrb[0].mxu0
      %v1853 = vpop.f32.mrb[0].mxu0
      %v1854 = vadd.f32 %v1693, %v1853
      %v1855 = vpop.f32.mrb[0].mxu0
      %1856 = vmatprep.mubr.bf16.mxu0 0
      %1857 = vmatmul.mubr.bf16.gmra.mrb[0].mxu0 %v1388
      %v1858 = vpop.f32.mrb[0].mxu0
      %v1859 = vadd.f32 %v1698, %v1858
      %v1860 = vpop.f32.mrb[0].mxu0
      %v1861 = vpop.f32.mrb[0].mxu0
      %v1862 = vadd.f32 %v1701, %v1861
      %v1863 = vpop.f32.mrb[0].mxu0
      %1864 = vmatprep.mubr.bf16.mxu0 0
      %1865 = vmatmul.mubr.bf16.gmra.mrb[0].mxu0 %v1391
      %v1866 = vpop.f32.mrb[0].mxu0
      %v1867 = vadd.f32 %v1706, %v1866
      %v1868 = vpop.f32.mrb[0].mxu0
      %v1869 = vpop.f32.mrb[0].mxu0
      %v1870 = vadd.f32 %v1709, %v1869
      %v1871 = vpop.f32.mrb[0].mxu0
      %1872 = vmatprep.mubr.bf16.mxu0 0
      %1873 = vmatmul.mubr.bf16.gmra.mrb[0].mxu0 %v1394
      %v1874 = vpop.f32.mrb[0].mxu0
      %v1875 = vadd.f32 %v1714, %v1874
      %v1876 = vpop.f32.mrb[0].mxu0
      %v1877 = vpop.f32.mrb[0].mxu0
      %v1878 = vadd.f32 %v1717, %v1877
      %v1879 = vpop.f32.mrb[0].mxu0
      %1880 = vmatprep.mubr.bf16.mxu0 0
      %1881 = vmatmul.mubr.bf16.gmra.mrb[0].mxu0 %v1397
      %v1882 = vpop.f32.mrb[0].mxu0
      %v1883 = vadd.f32 %v1722, %v1882
      %v1884 = vpop.f32.mrb[0].mxu0
      %v1885 = vpop.f32.mrb[0].mxu0
      %v1886 = vadd.f32 %v1725, %v1885
      %v1887 = vpop.f32.mrb[0].mxu0
      %1888 = vmatprep.mubr.bf16.mxu0 0
      %1889 = vmatmul.mubr.bf16.gmra.mrb[0].mxu0 %v1400
      %v1890 = vpop.f32.mrb[0].mxu0
      %v1891 = vadd.f32 %v1730, %v1890
      %v1892 = vpop.f32.mrb[0].mxu0
      %v1893 = vpop.f32.mrb[0].mxu0
      %v1894 = vadd.f32 %v1733, %v1893
      %v1895 = vpop.f32.mrb[0].mxu0
      %1896 = vmatprep.mubr.bf16.mxu0 0
      %1897 = vmatmul.mubr.bf16.gmra.mrb[0].mxu0 %v1403
      %v1898 = vpop.f32.mrb[0].mxu0
      %v1899 = vadd.f32 %v1738, %v1898
      %v1900 = vpop.f32.mrb[0].mxu0
      %v1901 = vpop.f32.mrb[0].mxu0
      %v1902 = vadd.f32 %v1741, %v1901
      %v1903 = vpop.f32.mrb[0].mxu0
      %1904 = vmatprep.mubr.bf16.mxu0 0
      %1905 = vmatmul.mubr.bf16.gmra.mrb[0].mxu0 %v1406
      %v1906 = vpop.f32.mrb[0].mxu0
      %v1907 = vadd.f32 %v1746, %v1906
      %v1908 = vpop.f32.mrb[0].mxu0
      %v1909 = vpop.f32.mrb[0].mxu0
      %v1910 = vadd.f32 %v1749, %v1909
      %v1911 = vpop.f32.mrb[0].mxu0
      %1912 = vmatprep.mubr.bf16.mxu0 0
      %1913 = vmatmul.mubr.bf16.gmra.mrb[0].mxu0 %v1409
      %v1914 = vpop.f32.mrb[0].mxu0
      %v1915 = vadd.f32 %v1754, %v1914
      %v1916 = vpop.f32.mrb[0].mxu0
      %v1917 = vpop.f32.mrb[0].mxu0
      %v1918 = vadd.f32 %v1757, %v1917
      %v1919 = vpop.f32.mrb[0].mxu0
      %1920 = vmatprep.mubr.bf16.mxu0 0
      %1921 = vmatmul.mubr.bf16.gmra.mrb[0].mxu0 %v1412
      %v1922 = vpop.f32.mrb[0].mxu0
      %v1923 = vadd.f32 %v1762, %v1922
      %v1924 = vpop.f32.mrb[0].mxu0
      %v1925 = vpop.f32.mrb[0].mxu0
      %v1926 = vadd.f32 %v1765, %v1925
      %v1927 = vpop.f32.mrb[0].mxu0
      %1928 = vmatprep.mubr.bf16.mxu0 0
      %1929 = vmatmul.mubr.bf16.gmra.mrb[0].mxu0 %v1415
      %v1930 = vpop.f32.mrb[0].mxu0
      %v1931 = vadd.f32 %v1770, %v1930
      %v1932 = vpop.f32.mrb[0].mxu0
      %v1933 = vpop.f32.mrb[0].mxu0
      %v1934 = vadd.f32 %v1773, %v1933
      %v1935 = vpop.f32.mrb[0].mxu0
      %1936 = vdwg.mxu0
      %1937 = vst [vmem:[%s226] sm:$0xff] %v1811
      %1938 = vst [vmem:[%s226 + $0x8] sm:$0xff] %v1814
      %1939 = vst [vmem:[%s226 + $0x10] sm:$0xff] %v1819
      %1940 = vst [vmem:[%s226 + $0x18] sm:$0xff] %v1822
      %1941 = vst [vmem:[%s226 + $0x20] sm:$0xff] %v1827
      %1942 = vst [vmem:[%s226 + $0x28] sm:$0xff] %v1830
      %1943 = vst [vmem:[%s226 + $0x30] sm:$0xff] %v1835
      %1944 = vst [vmem:[%s226 + $0x38] sm:$0xff] %v1838
      %1945 = vst [vmem:[%s226 + $0x40] sm:$0xff] %v1843
      %1946 = vst [vmem:[%s226 + $0x48] sm:$0xff] %v1846
      %1947 = vst [vmem:[%s226 + $0x50] sm:$0xff] %v1851
      %1948 = vst [vmem:[%s226 + $0x58] sm:$0xff] %v1854
      %1949 = vst [vmem:[%s226 + $0x60] sm:$0xff] %v1859
      %1950 = vst [vmem:[%s226 + $0x68] sm:$0xff] %v1862
      %1951 = vst [vmem:[%s226 + $0x70] sm:$0xff] %v1867
      %1952 = vst [vmem:[%s226 + $0x78] sm:$0xff] %v1870
      %1953 = vst [vmem:[%s226 + $0x80] sm:$0xff] %v1875
      %1954 = vst [vmem:[%s226 + $0x88] sm:$0xff] %v1878
      %1955 = vst [vmem:[%s226 + $0x90] sm:$0xff] %v1883
      %1956 = vst [vmem:[%s226 + $0x98] sm:$0xff] %v1886
      %1957 = vst [vmem:[%s226 + $0xa0] sm:$0xff] %v1891
      %1958 = vst [vmem:[%s226 + $0xa8] sm:$0xff] %v1894
      %1959 = vst [vmem:[%s226 + $0xb0] sm:$0xff] %v1899
      %1960 = vst [vmem:[%s226 + $0xb8] sm:$0xff] %v1902
      %1961 = vst [vmem:[%s226 + $0xc0] sm:$0xff] %v1907
      %1962 = vst [vmem:[%s226 + $0xc8] sm:$0xff] %v1910
      %1963 = vst [vmem:[%s226 + $0xd0] sm:$0xff] %v1915
      %1964 = vst [vmem:[%s226 + $0xd8] sm:$0xff] %v1918
      %1965 = vst [vmem:[%s226 + $0xe0] sm:$0xff] %v1923
      %1966 = vst [vmem:[%s226 + $0xe8] sm:$0xff] %v1926
      %1967 = vst [vmem:[%s226 + $0xf0] sm:$0xff] %v1931
      %1968 = vst [vmem:[%s226 + $0xf8] sm:$0xff] %v1934
      %s1969 = smul.u32 32, %s16
      %p1970 = scmp.lt.s32.totalorder %s1969, 63
      %s1971 = scalar_select %p1970, %s1969, 63
      %s1972 = smul.addr %s1971, 8
      %s1973 = scalar_lea.vmem %s5, %s1972
      // Predicated region
      $region41: #{mlp_forward.1} parent=39 // pred_check
        %p1974 = pneg %p144
      $region42: #{mlp_forward.1} parent=39 // pred_check_branch
        %1976 = sbr.rel (%p1974) target = $region44
      $region43: #{mlp_forward.1} parent=39 // pred_region
        %s1977 = smul.u32 32, %s16
      $region44: #{mlp_forward.1} parent=39 // pred_fallthru
        _
    $region40: #{mlp_forward.1} parent=5 // pred_fallthru
      _
    %p1978 = scmp.le.s32.totalorder 2, %s11
    // Predicated region
    $region45: #{mlp_forward.1} parent=5 // pred_check
      %p1979 = pneg %p1978
    $region46: #{mlp_forward.1} parent=5 // pred_check_branch
      %1981 = sbr.rel (%p1979) target = $region48
    $region47: #{mlp_forward.1} parent=5 // pred_region
      %s1982 = ssub.s32 %s11, 2
      // Predicated region
      $region49: #{mlp_forward.1} parent=47 // pred_check
        %p1983 = pneg %p150
      $region50: #{mlp_forward.1} parent=47 // pred_check_branch
        %1985 = sbr.rel (%p1983) target = $region52
      $region51: #{mlp_forward.1} parent=47 // pred_region
        %s1986 = smul.u32 32, %s17
        %p1987 = scmp.lt.s32.totalorder %s1986, 63
        %s1988 = scalar_select %p1987, %s1986, 63
        %s1989 = smul.addr %s1988, 8
        %s1990 = scalar_lea.vmem %s5, %s1989
      $region52: #{mlp_forward.1} parent=47 // pred_fallthru
        _
    $region48: #{mlp_forward.1} parent=5 // pred_fallthru
      _
  $region6: #{mlp_forward.1} parent=0 // loop_footer
    %s15 = sadd.s32 1, %s11
  $region7: #{mlp_forward.1} parent=0 // loop_footer_branch
    %10 = sbr.rel target = $region3
  $region8: #{mlp_forward.1} parent=0 // loop_exit
    _

</llo_original>
